<compile_context>
chip_gen: v6e
topology: v6e:2x2x1
jax: 0.10.0
libtpu: 0.0.40
codegen_flags: <defaults>
</compile_context>

<pallas_src>
import functools

import numpy as np
import jax
import jax.numpy as jnp
from jax.experimental import pallas as pl
from jax.experimental.pallas import tpu as pltpu


# ----------------------------- matrix builders ------------------------------

def _round_up(x, m):
    return -(-x // m) * m


def _avg_pool_matrix(n: int) -> np.ndarray:
    """A (Sa, n) such that A @ X @ A.T == AvgPool2d(kernel=3, stride=2)(X)."""
    sa = (n - 3) // 2 + 1
    a = np.zeros((sa, n), np.float32)
    for i in range(sa):
        a[i, 2 * i:2 * i + 3] = 1.0 / 3.0
    return a


def _sel_matrices(n: int):
    """S_d (Sm, n), d=0..2, with S_d[i, 2*i+d] = 1 (max-pool window selectors)."""
    sm = (n - 3) // 2 + 1
    mats = []
    for d in range(3):
        s = np.zeros((sm, n), np.float32)
        for i in range(sm):
            s[i, 2 * i + d] = 1.0
        mats.append(s)
    return mats


def _upsample_matrix(out_size: int, in_size: int) -> np.ndarray:
    """U (out, in): 1-D bilinear interpolation, PyTorch align_corners=False."""
    u = np.zeros((out_size, in_size), np.float32)
    scale = in_size / out_size
    for o in range(out_size):
        src = max((o + 0.5) * scale - 0.5, 0.0)
        i0 = min(int(np.floor(src)), in_size - 1)
        i1 = min(i0 + 1, in_size - 1)
        lam = src - i0
        u[o, i0] += 1.0 - lam
        u[o, i1] += lam
    return u


def _spatial_transpose_perm(sm: int) -> np.ndarray:
    """Pt: right-multiplying a (·, sm*sm) row-major spatial map swaps H' and W'."""
    pt = np.zeros((sm * sm, sm * sm), np.float32)
    for i in range(sm):
        for j in range(sm):
            pt[j * sm + i, i * sm + j] = 1.0
    return pt


# --------------------------------- kernel -----------------------------------

def _sam_kernel(x_ref, aat_ref, sst_ref, w3_ref, pt_ref, uut_ref, o_ref, *,
                c, cp, bblk, pad_sm):
    rb = bblk * cp
    x = x_ref[...]                                                       # bf16 (rb, HW)

    # AvgPool2d(3, 2): one Kronecker matmul (lane-dense padded output).
    avg = jnp.dot(x, aat_ref[...], preferred_element_type=jnp.float32)  # (rb, pad_sa)

    # MaxPool2d(3, 2): one matmul against 9 window-offset selector blocks,
    # then a cheap VPU max across the 9 slabs.
    picks = jnp.dot(avg.astype(jnp.bfloat16), sst_ref[...],
                    preferred_element_type=jnp.float32)                 # (rb, 9*pad_sm)
    ds = picks[:, 0:pad_sm]
    for d in range(1, 9):
        ds = jnp.maximum(ds, picks[:, d * pad_sm:(d + 1) * pad_sm])     # (rb, pad_sm)

    # conv_f / conv_g / conv_h: shared dense (3*Cp, Cp) weight, contracted over
    # channels per batch element (no bblk^2 block-diagonal weight).
    dsb = ds.astype(jnp.bfloat16)
    if bblk == 1:
        fgh = jnp.dot(w3_ref[...], dsb, preferred_element_type=jnp.float32)
        fgh = fgh.reshape(1, 3 * cp, pad_sm)
    else:
        w3 = jnp.broadcast_to(w3_ref[...], (bblk, 3 * cp, cp))
        fgh = jnp.einsum('boc,bcs->bos', w3, dsb.reshape(bblk, cp, pad_sm),
                         preferred_element_type=jnp.float32)            # (bblk,3cp,pad_sm)
    f = fgh[:, 0:cp, :]
    g = fgh[:, cp:2 * cp, :]
    h = fgh[:, 2 * cp:3 * cp, :]

    # torch.transpose(f, 2, 3): tiny spatial-permutation matmul after the conv.
    f_t = jnp.dot(f.reshape(rb, pad_sm).astype(jnp.bfloat16), pt_ref[...],
                  preferred_element_type=jnp.float32).reshape(bblk, cp, pad_sm)

    # legacy torch.nn.Softmax() -> implicit channel softmax; padded channels are
    # pushed to -inf so they do not perturb the denominator.
    s = f_t * g
    if cp != c:
        chan = jax.lax.broadcasted_iota(jnp.int32, (1, cp, pad_sm), 1)
        s = s + jnp.where(chan < c, 0.0, -1e30)
    m = jnp.max(s, axis=1, keepdims=True)
    e = jnp.exp(s - m)
    attn = e * pl.reciprocal(jnp.sum(e, axis=1, keepdims=True))
    out_small = (h * attn).reshape(rb, pad_sm).astype(jnp.bfloat16)

    # bilinear Upsample(size=(H, W), align_corners=False): one Kronecker matmul,
    # lane-dense (HW) output store.
    o_ref[...] = jnp.dot(out_small, uut_ref[...],
                         preferred_element_type=jnp.float32).astype(o_ref.dtype)


# -------------------------------- wrapper ------------------------------------

def _pick_bblk(n, cp, hw, target_rows=256, vmem_block_cap=8 << 20):
    """Largest batch-block keeping rb = bblk*cp <= target MXU rows, per-step
    x/out blocks modest in VMEM and (when possible) >= 2 grid steps (megacore)."""
    best = 1
    for d in range(1, n + 1):
        if n % d:
            continue
        if d * cp > target_rows:
            continue
        if d * cp * hw * 6 > vmem_block_cap:     # bf16 in + f32 out per step
            continue
        if n >= 2 and n // d < 2:                # keep grid >= 2 for v7x megacore
            continue
        best = d
    return best


def spatial_attention_module(x, wf, wg, wh):
    n, c, hh, ww = x.shape
    assert hh == ww, "square spatial input expected"
    size = hh
    sa = (size - 3) // 2 + 1                    # spatial after AvgPool2d(3, 2)
    sm = (sa - 3) // 2 + 1                      # spatial after MaxPool2d(3, 2)
    hw = size * size
    sa2, sm2 = sa * sa, sm * sm
    pad_sa = _round_up(sa2, 128)                # lane-dense intermediates
    pad_sm = _round_up(sm2, 128)
    cp = _round_up(c, 8)                        # channel pad -> clean (8,128) tiles
    bblk = _pick_bblk(n, cp, hw)
    rb = bblk * cp

    # ---- host-side constant matrices (numpy, zero-padded to dense tiles) ----
    a = _avg_pool_matrix(size)
    sels = _sel_matrices(sa)
    u = _upsample_matrix(size, sm)
    ptm = _spatial_transpose_perm(sm)

    aat = np.zeros((hw, pad_sa), np.float32)
    aat[:, :sa2] = np.kron(a, a).T                                  # avg-pool kron

    sst = np.zeros((pad_sa, 9 * pad_sm), np.float32)                # 9 selector blocks
    idx = 0
    for d1 in range(3):
        for d2 in range(3):
            sst[:sa2, idx * pad_sm:idx * pad_sm + sm2] = np.kron(sels[d1], sels[d2]).T
            idx += 1

    pt = np.zeros((pad_sm, pad_sm), np.float32)
    pt[:sm2, :sm2] = ptm                                            # spatial transpose

    uut = np.zeros((pad_sm, hw), np.float32)
    uut[:sm2, :] = np.kron(u, u).T                                  # upsample kron

    w3 = np.zeros((3 * cp, cp), np.float32)                         # [f; g; h] weights
    w3[0:c, 0:c] = np.asarray(wf)
    w3[cp:cp + c, 0:c] = np.asarray(wg)
    w3[2 * cp:2 * cp + c, 0:c] = np.asarray(wh)

    # bf16 input slab: batch-major rows, channels padded to cp, lane-dense HW.
    x3 = jnp.pad(x.reshape(n, c, hw), ((0, 0), (0, cp - c), (0, 0)))
    x2 = x3.reshape(n * cp, hw).astype(jnp.bfloat16)

    kernel = functools.partial(_sam_kernel, c=c, cp=cp, bblk=bblk, pad_sm=pad_sm)

    def build(single_buffer_consts):
        def cspec(shape):
            if single_buffer_consts:
                return pl.BlockSpec(shape, lambda i: (0, 0),
                                    pipeline_mode=pl.Buffered(1))
            return pl.BlockSpec(shape, lambda i: (0, 0))
        return pl.pallas_call(
            kernel,
            out_shape=jax.ShapeDtypeStruct((n * cp, hw), jnp.float32),
            grid=(n // bblk,),
            in_specs=[
                pl.BlockSpec((rb, hw), lambda i: (i, 0)),           # x block
                cspec((hw, pad_sa)),                                # avg-pool kron
                cspec((pad_sa, 9 * pad_sm)),                        # max-pool selectors
                cspec((3 * cp, cp)),                                # fused conv weight
                cspec((pad_sm, pad_sm)),                            # spatial transpose
                cspec((pad_sm, hw)),                                # upsample kron
            ],
            out_specs=pl.BlockSpec((rb, hw), lambda i: (i, 0)),
            compiler_params=pltpu.CompilerParams(
                dimension_semantics=("parallel",),
                vmem_limit_bytes=32 * 1024 * 1024),
        )

    args = (x2,
            jnp.asarray(aat, jnp.bfloat16),
            jnp.asarray(sst, jnp.bfloat16),
            jnp.asarray(w3, jnp.bfloat16),
            jnp.asarray(pt, jnp.bfloat16),
            jnp.asarray(uut, jnp.bfloat16))

    try:
        out2 = jax.block_until_ready(build(True)(*args))
    except Exception:
        # Pallas version without single-buffered constants -> default buffering.
        out2 = jax.block_until_ready(build(False)(*args))

    return out2.reshape(n, cp, size, size)[:, :c]


# ------------------------- plain-JAX reference (check) -----------------------

def _reference(x, wf, wg, wh):
    n, c, size, _ = x.shape
    sa = (size - 3) // 2 + 1
    hi = jax.lax.Precision.HIGHEST
    a = jnp.asarray(_avg_pool_matrix(size))
    sels = [jnp.asarray(s) for s in _sel_matrices(sa)]
    sm = (sa - 3) // 2 + 1
    u = jnp.asarray(_upsample_matrix(size, sm))

    avg = jnp.einsum('ai,bj,ncij->ncab', a, a, x, precision=hi)
    cands = jnp.stack([jnp.einsum('ai,bj,ncij->ncab', sels[d1], sels[d2], avg,
                                  precision=hi)
                       for d1 in range(3) for d2 in range(3)])
    ds = cands.max(axis=0)
    f = jnp.einsum('oc,ncij->noij', wf, ds, precision=hi)
    g = jnp.einsum('oc,ncij->noij', wg, ds, precision=hi)
    h = jnp.einsum('oc,ncij->noij', wh, ds, precision=hi)
    s = jnp.swapaxes(f, 2, 3) * g
    attn = jax.nn.softmax(s, axis=1)
    out = jnp.einsum('pi,qj,ncij->ncpq', u, u, h * attn, precision=hi)
    return out


# ---------------------------------- main -------------------------------------

if __name__ == "__main__":
    key = jax.random.PRNGKey(0)
    kx, kf, kg, kh = jax.random.split(key, 4)
    N, C, SIZE = 2, 4, 16

    x = jax.random.normal(kx, (N, C, SIZE, SIZE), jnp.float32)
    wf = 0.3 * jax.random.normal(kf, (C, C), jnp.float32)   # conv_f 1x1 weight
    wg = 0.3 * jax.random.normal(kg, (C, C), jnp.float32)   # conv_g 1x1 weight
    wh = 0.3 * jax.random.normal(kh, (C, C), jnp.float32)   # conv_h 1x1 weight

    out = spatial_attention_module(x, wf, wg, wh)
    out = jax.block_until_ready(out)

    assert out.shape == (N, C, SIZE, SIZE)
    assert bool(jnp.all(jnp.isfinite(out)))

    ref = _reference(x, wf, wg, wh)
    err = float(jnp.max(jnp.abs(out - ref)))
    assert err < 3e-2, f"max abs error vs reference: {err}"

    print("KERNEL_OK")
</pallas_src>

<mosaic_0001>
module attributes {stable_mosaic.version = 11 : i64} {
  func.func @_sam_kernel(%arg0: i32, %arg1: memref<8x256xbf16, #tpu.memory_space<vmem>>, %arg2: memref<256x128xbf16, #tpu.memory_space<vmem>>, %arg3: memref<128x1152xbf16, #tpu.memory_space<vmem>>, %arg4: memref<24x8xbf16, #tpu.memory_space<vmem>>, %arg5: memref<128x128xbf16, #tpu.memory_space<vmem>>, %arg6: memref<128x256xbf16, #tpu.memory_space<vmem>>, %arg7: memref<8x256xf32, #tpu.memory_space<vmem>>) attributes {dimension_semantics = [#tpu.dimension_semantics<parallel>], iteration_bounds = array<i64: 2>, scalar_prefetch = 0 : i64, scratch_operands = 0 : i64, tpu.core_type = #tpu.core_type<tc>, window_params = [{transform_indices = @transform_0, window_bounds = array<i64: 8, 256>}, {pipeline_mode = #tpu.pipeline_mode<synchronous>, transform_indices = @transform_1, window_bounds = array<i64: 256, 128>}, {pipeline_mode = #tpu.pipeline_mode<synchronous>, transform_indices = @transform_2, window_bounds = array<i64: 128, 1152>}, {pipeline_mode = #tpu.pipeline_mode<synchronous>, transform_indices = @transform_3, window_bounds = array<i64: 24, 8>}, {pipeline_mode = #tpu.pipeline_mode<synchronous>, transform_indices = @transform_4, window_bounds = array<i64: 128, 128>}, {pipeline_mode = #tpu.pipeline_mode<synchronous>, transform_indices = @transform_5, window_bounds = array<i64: 128, 256>}, {transform_indices = @transform_6, window_bounds = array<i64: 8, 256>}]} {
    %c0 = arith.constant 0 : index
    %c0_0 = arith.constant 0 : index
    %0 = vector.load %arg1[%c0, %c0_0] : memref<8x256xbf16, #tpu.memory_space<vmem>>, vector<8x256xbf16>
    %c0_1 = arith.constant 0 : index
    %c0_2 = arith.constant 0 : index
    %1 = vector.load %arg2[%c0_1, %c0_2] : memref<256x128xbf16, #tpu.memory_space<vmem>>, vector<256x128xbf16>
    %cst = arith.constant dense<0.000000e+00> : vector<8x128xf32>
    %2 = tpu.matmul %0, %1, %cst {dimension_numbers = #tpu.dot_dimension_numbers<[1], [0], [0], [1], [0, 0, 1, 1], [], []>} : vector<8x256xbf16>, vector<256x128xbf16>, vector<8x128xf32> -> vector<8x128xf32>
    %3 = arith.truncf %2 : vector<8x128xf32> to vector<8x128xbf16>
    %c0_3 = arith.constant 0 : index
    %c0_4 = arith.constant 0 : index
    %4 = vector.load %arg3[%c0_3, %c0_4] : memref<128x1152xbf16, #tpu.memory_space<vmem>>, vector<128x1152xbf16>
    %cst_5 = arith.constant dense<0.000000e+00> : vector<8x1152xf32>
    %5 = tpu.matmul %3, %4, %cst_5 {dimension_numbers = #tpu.dot_dimension_numbers<[1], [0], [0], [1], [0, 0, 1, 1], [], []>} : vector<8x128xbf16>, vector<128x1152xbf16>, vector<8x1152xf32> -> vector<8x1152xf32>
    %6 = vector.extract_strided_slice %5 {offsets = [0, 0], sizes = [8, 128], strides = [1, 1]} : vector<8x1152xf32> to vector<8x128xf32>
    %7 = vector.extract_strided_slice %5 {offsets = [0, 128], sizes = [8, 128], strides = [1, 1]} : vector<8x1152xf32> to vector<8x128xf32>
    %8 = arith.maximumf %6, %7 : vector<8x128xf32>
    %9 = vector.extract_strided_slice %5 {offsets = [0, 256], sizes = [8, 128], strides = [1, 1]} : vector<8x1152xf32> to vector<8x128xf32>
    %10 = arith.maximumf %8, %9 : vector<8x128xf32>
    %11 = vector.extract_strided_slice %5 {offsets = [0, 384], sizes = [8, 128], strides = [1, 1]} : vector<8x1152xf32> to vector<8x128xf32>
    %12 = arith.maximumf %10, %11 : vector<8x128xf32>
    %13 = vector.extract_strided_slice %5 {offsets = [0, 512], sizes = [8, 128], strides = [1, 1]} : vector<8x1152xf32> to vector<8x128xf32>
    %14 = arith.maximumf %12, %13 : vector<8x128xf32>
    %15 = vector.extract_strided_slice %5 {offsets = [0, 640], sizes = [8, 128], strides = [1, 1]} : vector<8x1152xf32> to vector<8x128xf32>
    %16 = arith.maximumf %14, %15 : vector<8x128xf32>
    %17 = vector.extract_strided_slice %5 {offsets = [0, 768], sizes = [8, 128], strides = [1, 1]} : vector<8x1152xf32> to vector<8x128xf32>
    %18 = arith.maximumf %16, %17 : vector<8x128xf32>
    %19 = vector.extract_strided_slice %5 {offsets = [0, 896], sizes = [8, 128], strides = [1, 1]} : vector<8x1152xf32> to vector<8x128xf32>
    %20 = arith.maximumf %18, %19 : vector<8x128xf32>
    %21 = vector.extract_strided_slice %5 {offsets = [0, 1024], sizes = [8, 128], strides = [1, 1]} : vector<8x1152xf32> to vector<8x128xf32>
    %22 = arith.maximumf %20, %21 : vector<8x128xf32>
    %23 = arith.truncf %22 : vector<8x128xf32> to vector<8x128xbf16>
    %c0_6 = arith.constant 0 : index
    %c0_7 = arith.constant 0 : index
    %24 = vector.load %arg4[%c0_6, %c0_7] : memref<24x8xbf16, #tpu.memory_space<vmem>>, vector<24x8xbf16>
    %cst_8 = arith.constant dense<0.000000e+00> : vector<24x128xf32>
    %25 = tpu.matmul %24, %23, %cst_8 {dimension_numbers = #tpu.dot_dimension_numbers<[1], [0], [0], [1], [0, 0, 1, 1], [], []>} : vector<24x8xbf16>, vector<8x128xbf16>, vector<24x128xf32> -> vector<24x128xf32>
    %26 = vector.shape_cast %25 : vector<24x128xf32> to vector<1x24x128xf32>
    %27 = vector.extract_strided_slice %26 {offsets = [0, 0, 0], sizes = [1, 8, 128], strides = [1, 1, 1]} : vector<1x24x128xf32> to vector<1x8x128xf32>
    %28 = vector.extract_strided_slice %26 {offsets = [0, 8, 0], sizes = [1, 8, 128], strides = [1, 1, 1]} : vector<1x24x128xf32> to vector<1x8x128xf32>
    %29 = vector.extract_strided_slice %26 {offsets = [0, 16, 0], sizes = [1, 8, 128], strides = [1, 1, 1]} : vector<1x24x128xf32> to vector<1x8x128xf32>
    %30 = vector.shape_cast %27 : vector<1x8x128xf32> to vector<8x128xf32>
    %31 = arith.truncf %30 : vector<8x128xf32> to vector<8x128xbf16>
    %c0_9 = arith.constant 0 : index
    %c0_10 = arith.constant 0 : index
    %32 = vector.load %arg5[%c0_9, %c0_10] : memref<128x128xbf16, #tpu.memory_space<vmem>>, vector<128x128xbf16>
    %cst_11 = arith.constant dense<0.000000e+00> : vector<8x128xf32>
    %33 = tpu.matmul %31, %32, %cst_11 {dimension_numbers = #tpu.dot_dimension_numbers<[1], [0], [0], [1], [0, 0, 1, 1], [], []>} : vector<8x128xbf16>, vector<128x128xbf16>, vector<8x128xf32> -> vector<8x128xf32>
    %34 = vector.shape_cast %33 : vector<8x128xf32> to vector<1x8x128xf32>
    %35 = arith.mulf %34, %28 : vector<1x8x128xf32>
    %36 = tpu.iota {dimensions = array<i32: 1>} : vector<1x8x128xi32>
    %c4_i32 = arith.constant 4 : i32
    %37 = vector.broadcast %c4_i32 : i32 to vector<1x8x128xi32>
    %38 = arith.cmpi slt, %36, %37 : vector<1x8x128xi32>
    %cst_12 = arith.constant 0.000000e+00 : f32
    %cst_13 = arith.constant -1.000000e+30 : f32
    %39 = vector.broadcast %cst_12 : f32 to vector<1x8x128xf32>
    %40 = vector.broadcast %cst_13 : f32 to vector<1x8x128xf32>
    %41 = arith.select %38, %39, %40 : vector<1x8x128xi1>, vector<1x8x128xf32>
    %42 = arith.addf %35, %41 : vector<1x8x128xf32>
    %cst_14 = arith.constant dense<0xFF800000> : vector<1x128xf32>
    %43 = vector.multi_reduction <maximumf>, %42, %cst_14 [1] : vector<1x8x128xf32> to vector<1x128xf32>
    %44 = vector.shape_cast %43 : vector<1x128xf32> to vector<1x1x128xf32>
    %45 = vector.broadcast %44 : vector<1x1x128xf32> to vector<1x8x128xf32>
    %46 = arith.subf %42, %45 : vector<1x8x128xf32>
    %47 = math.exp %46 : vector<1x8x128xf32>
    %cst_15 = arith.constant dense<0.000000e+00> : vector<1x128xf32>
    %48 = vector.multi_reduction <add>, %47, %cst_15 [1] : vector<1x8x128xf32> to vector<1x128xf32>
    %49 = vector.shape_cast %48 : vector<1x128xf32> to vector<1x1x128xf32>
    %50 = tpu.reciprocal %49 : vector<1x1x128xf32> -> vector<1x1x128xf32>
    %51 = vector.broadcast %50 : vector<1x1x128xf32> to vector<1x8x128xf32>
    %52 = arith.mulf %47, %51 : vector<1x8x128xf32>
    %53 = arith.mulf %29, %52 : vector<1x8x128xf32>
    %54 = vector.shape_cast %53 : vector<1x8x128xf32> to vector<8x128xf32>
    %55 = arith.truncf %54 : vector<8x128xf32> to vector<8x128xbf16>
    %c0_16 = arith.constant 0 : index
    %c0_17 = arith.constant 0 : index
    %56 = vector.load %arg6[%c0_16, %c0_17] : memref<128x256xbf16, #tpu.memory_space<vmem>>, vector<128x256xbf16>
    %cst_18 = arith.constant dense<0.000000e+00> : vector<8x256xf32>
    %57 = tpu.matmul %55, %56, %cst_18 {dimension_numbers = #tpu.dot_dimension_numbers<[1], [0], [0], [1], [0, 0, 1, 1], [], []>} : vector<8x128xbf16>, vector<128x256xbf16>, vector<8x256xf32> -> vector<8x256xf32>
    %c0_19 = arith.constant 0 : index
    %c0_20 = arith.constant 0 : index
    %58 = vector.load %arg7[%c0_19, %c0_20] : memref<8x256xf32, #tpu.memory_space<vmem>>, vector<8x256xf32>
    tpu.vector_store %arg7[%c0_19, %c0_20], %57 {strides = array<i32>} : memref<8x256xf32, #tpu.memory_space<vmem>>, vector<8x256xf32>,
    return
  }
  func.func @transform_0(%arg0: i32) -> (i32, i32) {
    %c0_i32 = arith.constant 0 : i32
    %c0_i32_0 = arith.constant 0 : i32
    return %arg0, %c0_i32 : i32, i32
  }
  func.func @transform_1(%arg0: i32) -> (i32, i32) {
    %c0_i32 = arith.constant 0 : i32
    %c0_i32_0 = arith.constant 0 : i32
    %c0_i32_1 = arith.constant 0 : i32
    return %c0_i32, %c0_i32_0 : i32, i32
  }
  func.func @transform_2(%arg0: i32) -> (i32, i32) {
    %c0_i32 = arith.constant 0 : i32
    %c0_i32_0 = arith.constant 0 : i32
    %c0_i32_1 = arith.constant 0 : i32
    return %c0_i32, %c0_i32_0 : i32, i32
  }
  func.func @transform_3(%arg0: i32) -> (i32, i32) {
    %c0_i32 = arith.constant 0 : i32
    %c0_i32_0 = arith.constant 0 : i32
    %c0_i32_1 = arith.constant 0 : i32
    return %c0_i32, %c0_i32_0 : i32, i32
  }
  func.func @transform_4(%arg0: i32) -> (i32, i32) {
    %c0_i32 = arith.constant 0 : i32
    %c0_i32_0 = arith.constant 0 : i32
    %c0_i32_1 = arith.constant 0 : i32
    return %c0_i32, %c0_i32_0 : i32, i32
  }
  func.func @transform_5(%arg0: i32) -> (i32, i32) {
    %c0_i32 = arith.constant 0 : i32
    %c0_i32_0 = arith.constant 0 : i32
    %c0_i32_1 = arith.constant 0 : i32
    return %c0_i32, %c0_i32_0 : i32, i32
  }
  func.func @transform_6(%arg0: i32) -> (i32, i32) {
    %c0_i32 = arith.constant 0 : i32
    %c0_i32_0 = arith.constant 0 : i32
    return %arg0, %c0_i32 : i32, i32
  }
}

module attributes {stable_mosaic.version = 11 : i64} {
  func.func @_sam_kernel(%arg0: i32, %arg1: memref<8x256xbf16, #tpu.memory_space<vmem>>, %arg2: memref<256x128xbf16, #tpu.memory_space<vmem>>, %arg3: memref<128x1152xbf16, #tpu.memory_space<vmem>>, %arg4: memref<24x8xbf16, #tpu.memory_space<vmem>>, %arg5: memref<128x128xbf16, #tpu.memory_space<vmem>>, %arg6: memref<128x256xbf16, #tpu.memory_space<vmem>>, %arg7: memref<8x256xf32, #tpu.memory_space<vmem>>) attributes {dimension_semantics = [#tpu.dimension_semantics<parallel>], iteration_bounds = array<i64: 2>, scalar_prefetch = 0 : i64, scratch_operands = 0 : i64, tpu.core_type = #tpu.core_type<tc>, window_params = [{transform_indices = @transform_0, window_bounds = array<i64: 8, 256>}, {pipeline_mode = #tpu.pipeline_mode<synchronous>, transform_indices = @transform_1, window_bounds = array<i64: 256, 128>}, {pipeline_mode = #tpu.pipeline_mode<synchronous>, transform_indices = @transform_2, window_bounds = array<i64: 128, 1152>}, {pipeline_mode = #tpu.pipeline_mode<synchronous>, transform_indices = @transform_3, window_bounds = array<i64: 24, 8>}, {pipeline_mode = #tpu.pipeline_mode<synchronous>, transform_indices = @transform_4, window_bounds = array<i64: 128, 128>}, {pipeline_mode = #tpu.pipeline_mode<synchronous>, transform_indices = @transform_5, window_bounds = array<i64: 128, 256>}, {transform_indices = @transform_6, window_bounds = array<i64: 8, 256>}]} {
    %c0 = arith.constant 0 : index
    %c0_0 = arith.constant 0 : index
    %0 = vector.load %arg1[%c0, %c0_0] : memref<8x256xbf16, #tpu.memory_space<vmem>>, vector<8x256xbf16>
    %c0_1 = arith.constant 0 : index
    %c0_2 = arith.constant 0 : index
    %1 = vector.load %arg2[%c0_1, %c0_2] : memref<256x128xbf16, #tpu.memory_space<vmem>>, vector<256x128xbf16>
    %cst = arith.constant dense<0.000000e+00> : vector<8x128xf32>
    %2 = tpu.matmul %0, %1, %cst {dimension_numbers = #tpu.dot_dimension_numbers<[1], [0], [0], [1], [0, 0, 1, 1], [], []>} : vector<8x256xbf16>, vector<256x128xbf16>, vector<8x128xf32> -> vector<8x128xf32>
    %3 = arith.truncf %2 : vector<8x128xf32> to vector<8x128xbf16>
    %c0_3 = arith.constant 0 : index
    %c0_4 = arith.constant 0 : index
    %4 = vector.load %arg3[%c0_3, %c0_4] : memref<128x1152xbf16, #tpu.memory_space<vmem>>, vector<128x1152xbf16>
    %cst_5 = arith.constant dense<0.000000e+00> : vector<8x1152xf32>
    %5 = tpu.matmul %3, %4, %cst_5 {dimension_numbers = #tpu.dot_dimension_numbers<[1], [0], [0], [1], [0, 0, 1, 1], [], []>} : vector<8x128xbf16>, vector<128x1152xbf16>, vector<8x1152xf32> -> vector<8x1152xf32>
    %6 = vector.extract_strided_slice %5 {offsets = [0, 0], sizes = [8, 128], strides = [1, 1]} : vector<8x1152xf32> to vector<8x128xf32>
    %7 = vector.extract_strided_slice %5 {offsets = [0, 128], sizes = [8, 128], strides = [1, 1]} : vector<8x1152xf32> to vector<8x128xf32>
    %8 = arith.maximumf %6, %7 : vector<8x128xf32>
    %9 = vector.extract_strided_slice %5 {offsets = [0, 256], sizes = [8, 128], strides = [1, 1]} : vector<8x1152xf32> to vector<8x128xf32>
    %10 = arith.maximumf %8, %9 : vector<8x128xf32>
    %11 = vector.extract_strided_slice %5 {offsets = [0, 384], sizes = [8, 128], strides = [1, 1]} : vector<8x1152xf32> to vector<8x128xf32>
    %12 = arith.maximumf %10, %11 : vector<8x128xf32>
    %13 = vector.extract_strided_slice %5 {offsets = [0, 512], sizes = [8, 128], strides = [1, 1]} : vector<8x1152xf32> to vector<8x128xf32>
    %14 = arith.maximumf %12, %13 : vector<8x128xf32>
    %15 = vector.extract_strided_slice %5 {offsets = [0, 640], sizes = [8, 128], strides = [1, 1]} : vector<8x1152xf32> to vector<8x128xf32>
    %16 = arith.maximumf %14, %15 : vector<8x128xf32>
    %17 = vector.extract_strided_slice %5 {offsets = [0, 768], sizes = [8, 128], strides = [1, 1]} : vector<8x1152xf32> to vector<8x128xf32>
    %18 = arith.maximumf %16, %17 : vector<8x128xf32>
    %19 = vector.extract_strided_slice %5 {offsets = [0, 896], sizes = [8, 128], strides = [1, 1]} : vector<8x1152xf32> to vector<8x128xf32>
    %20 = arith.maximumf %18, %19 : vector<8x128xf32>
    %21 = vector.extract_strided_slice %5 {offsets = [0, 1024], sizes = [8, 128], strides = [1, 1]} : vector<8x1152xf32> to vector<8x128xf32>
    %22 = arith.maximumf %20, %21 : vector<8x128xf32>
    %23 = arith.truncf %22 : vector<8x128xf32> to vector<8x128xbf16>
    %c0_6 = arith.constant 0 : index
    %c0_7 = arith.constant 0 : index
    %24 = vector.load %arg4[%c0_6, %c0_7] : memref<24x8xbf16, #tpu.memory_space<vmem>>, vector<24x8xbf16>
    %cst_8 = arith.constant dense<0.000000e+00> : vector<24x128xf32>
    %25 = tpu.matmul %24, %23, %cst_8 {dimension_numbers = #tpu.dot_dimension_numbers<[1], [0], [0], [1], [0, 0, 1, 1], [], []>} : vector<24x8xbf16>, vector<8x128xbf16>, vector<24x128xf32> -> vector<24x128xf32>
    %26 = vector.shape_cast %25 : vector<24x128xf32> to vector<1x24x128xf32>
    %27 = vector.extract_strided_slice %26 {offsets = [0, 0, 0], sizes = [1, 8, 128], strides = [1, 1, 1]} : vector<1x24x128xf32> to vector<1x8x128xf32>
    %28 = vector.extract_strided_slice %26 {offsets = [0, 8, 0], sizes = [1, 8, 128], strides = [1, 1, 1]} : vector<1x24x128xf32> to vector<1x8x128xf32>
    %29 = vector.extract_strided_slice %26 {offsets = [0, 16, 0], sizes = [1, 8, 128], strides = [1, 1, 1]} : vector<1x24x128xf32> to vector<1x8x128xf32>
    %30 = vector.shape_cast %27 : vector<1x8x128xf32> to vector<8x128xf32>
    %31 = arith.truncf %30 : vector<8x128xf32> to vector<8x128xbf16>
    %c0_9 = arith.constant 0 : index
    %c0_10 = arith.constant 0 : index
    %32 = vector.load %arg5[%c0_9, %c0_10] : memref<128x128xbf16, #tpu.memory_space<vmem>>, vector<128x128xbf16>
    %cst_11 = arith.constant dense<0.000000e+00> : vector<8x128xf32>
    %33 = tpu.matmul %31, %32, %cst_11 {dimension_numbers = #tpu.dot_dimension_numbers<[1], [0], [0], [1], [0, 0, 1, 1], [], []>} : vector<8x128xbf16>, vector<128x128xbf16>, vector<8x128xf32> -> vector<8x128xf32>
    %34 = vector.shape_cast %33 : vector<8x128xf32> to vector<1x8x128xf32>
    %35 = arith.mulf %34, %28 : vector<1x8x128xf32>
    %36 = tpu.iota {dimensions = array<i32: 1>} : vector<1x8x128xi32>
    %c4_i32 = arith.constant 4 : i32
    %37 = vector.broadcast %c4_i32 : i32 to vector<1x8x128xi32>
    %38 = arith.cmpi slt, %36, %37 : vector<1x8x128xi32>
    %cst_12 = arith.constant 0.000000e+00 : f32
    %cst_13 = arith.constant -1.000000e+30 : f32
    %39 = vector.broadcast %cst_12 : f32 to vector<1x8x128xf32>
    %40 = vector.broadcast %cst_13 : f32 to vector<1x8x128xf32>
    %41 = arith.select %38, %39, %40 : vector<1x8x128xi1>, vector<1x8x128xf32>
    %42 = arith.addf %35, %41 : vector<1x8x128xf32>
    %cst_14 = arith.constant dense<0xFF800000> : vector<1x128xf32>
    %43 = vector.multi_reduction <maximumf>, %42, %cst_14 [1] : vector<1x8x128xf32> to vector<1x128xf32>
    %44 = vector.shape_cast %43 : vector<1x128xf32> to vector<1x1x128xf32>
    %45 = vector.broadcast %44 : vector<1x1x128xf32> to vector<1x8x128xf32>
    %46 = arith.subf %42, %45 : vector<1x8x128xf32>
    %47 = math.exp %46 : vector<1x8x128xf32>
    %cst_15 = arith.constant dense<0.000000e+00> : vector<1x128xf32>
    %48 = vector.multi_reduction <add>, %47, %cst_15 [1] : vector<1x8x128xf32> to vector<1x128xf32>
    %49 = vector.shape_cast %48 : vector<1x128xf32> to vector<1x1x128xf32>
    %50 = tpu.reciprocal %49 : vector<1x1x128xf32> -> vector<1x1x128xf32>
    %51 = vector.broadcast %50 : vector<1x1x128xf32> to vector<1x8x128xf32>
    %52 = arith.mulf %47, %51 : vector<1x8x128xf32>
    %53 = arith.mulf %29, %52 : vector<1x8x128xf32>
    %54 = vector.shape_cast %53 : vector<1x8x128xf32> to vector<8x128xf32>
    %55 = arith.truncf %54 : vector<8x128xf32> to vector<8x128xbf16>
    %c0_16 = arith.constant 0 : index
    %c0_17 = arith.constant 0 : index
    %56 = vector.load %arg6[%c0_16, %c0_17] : memref<128x256xbf16, #tpu.memory_space<vmem>>, vector<128x256xbf16>
    %cst_18 = arith.constant dense<0.000000e+00> : vector<8x256xf32>
    %57 = tpu.matmul %55, %56, %cst_18 {dimension_numbers = #tpu.dot_dimension_numbers<[1], [0], [0], [1], [0, 0, 1, 1], [], []>} : vector<8x128xbf16>, vector<128x256xbf16>, vector<8x256xf32> -> vector<8x256xf32>
    %c0_19 = arith.constant 0 : index
    %c0_20 = arith.constant 0 : index
    %58 = vector.load %arg7[%c0_19, %c0_20] : memref<8x256xf32, #tpu.memory_space<vmem>>, vector<8x256xf32>
    tpu.vector_store %arg7[%c0_19, %c0_20], %57 {strides = array<i32>} : memref<8x256xf32, #tpu.memory_space<vmem>>, vector<8x256xf32>,
    return
  }
  func.func @transform_0(%arg0: i32) -> (i32, i32) {
    %c0_i32 = arith.constant 0 : i32
    %c0_i32_0 = arith.constant 0 : i32
    return %arg0, %c0_i32 : i32, i32
  }
  func.func @transform_1(%arg0: i32) -> (i32, i32) {
    %c0_i32 = arith.constant 0 : i32
    %c0_i32_0 = arith.constant 0 : i32
    %c0_i32_1 = arith.constant 0 : i32
    return %c0_i32, %c0_i32_0 : i32, i32
  }
  func.func @transform_2(%arg0: i32) -> (i32, i32) {
    %c0_i32 = arith.constant 0 : i32
    %c0_i32_0 = arith.constant 0 : i32
    %c0_i32_1 = arith.constant 0 : i32
    return %c0_i32, %c0_i32_0 : i32, i32
  }
  func.func @transform_3(%arg0: i32) -> (i32, i32) {
    %c0_i32 = arith.constant 0 : i32
    %c0_i32_0 = arith.constant 0 : i32
    %c0_i32_1 = arith.constant 0 : i32
    return %c0_i32, %c0_i32_0 : i32, i32
  }
  func.func @transform_4(%arg0: i32) -> (i32, i32) {
    %c0_i32 = arith.constant 0 : i32
    %c0_i32_0 = arith.constant 0 : i32
    %c0_i32_1 = arith.constant 0 : i32
    return %c0_i32, %c0_i32_0 : i32, i32
  }
  func.func @transform_5(%arg0: i32) -> (i32, i32) {
    %c0_i32 = arith.constant 0 : i32
    %c0_i32_0 = arith.constant 0 : i32
    %c0_i32_1 = arith.constant 0 : i32
    return %c0_i32, %c0_i32_0 : i32, i32
  }
  func.func @transform_6(%arg0: i32) -> (i32, i32) {
    %c0_i32 = arith.constant 0 : i32
    %c0_i32_0 = arith.constant 0 : i32
    return %arg0, %c0_i32 : i32, i32
  }
}

</mosaic_0001>

<llo_original>
// kernel: tpu_custom_call.1
$region0: #{tpu_custom_call.1}
  #allocation0 [shape = 'u32[]', space=smem, size = 0x4, offset = 0x4, fixed_abs, tag = 'smem constant byte address 0x4 - core index']
  #allocation1 [shape = 'u32[144,128]{1,0:T(1,128)}', space=vmem, size = 0x12000, scoped, tag = 'internal scratch']
  %s0 = inlined_call_operand.vmem [shape: bf16[16,256], index: 0, kind: input, shape index: {}]
  %s1 = inlined_call_operand.hbm [shape: bf16[256,128], index: 1, kind: input, shape index: {}]
  %s2 = inlined_call_operand.hbm [shape: bf16[128,1152], index: 2, kind: input, shape index: {}]
  %s3 = inlined_call_operand.vmem [shape: bf16[24,8], index: 3, kind: input, shape index: {}]
  %s4 = inlined_call_operand.hbm [shape: bf16[128,128], index: 4, kind: input, shape index: {}]
  %s5 = inlined_call_operand.hbm [shape: bf16[128,256], index: 5, kind: input, shape index: {}]
  %s6 = inlined_call_operand.hbm [shape: f32[16,256], index: 6, kind: output, shape index: {}]
  %s7 = sld [smem:[#allocation0]]
  $region73: #{tpu_custom_call.1} parent=0
    _
  %s9 = ssub.s32 1, %s7
  %s10 = scalar_select 0, %s9, %s7
  $region1: #{tpu_custom_call.1} parent=0
    #allocation2 [shape = 'u8[65536]{0}', space=vmem, size = 0x10000, scoped, tag = 'input window, operand 1, single buffered']
    #allocation3 [shape = 's32[2]{0}', space=sflag, size = 0x8, scoped, tag = 'scoped memory for tpu_custom_call.1']
    #allocation4 [shape = 's32[2]{0}', space=sflag, size = 0x8, scoped, tag = 'scoped memory for tpu_custom_call.1']
    #allocation5 [shape = 'u8[294912]{0}', space=vmem, size = 0x48000, scoped, tag = 'input window, operand 2, single buffered']
    #allocation6 [shape = 's32[1]{0}', space=sflag, size = 0x4, scoped, tag = 'scoped memory for tpu_custom_call.1']
    #allocation7 [shape = 'u8[32768]{0}', space=vmem, size = 0x8000, scoped, tag = 'input window, operand 4, single buffered']
    #allocation8 [shape = 'u8[65536]{0}', space=vmem, size = 0x10000, scoped, tag = 'input window, operand 5, single buffered']
    #allocation9 [shape = 's32[1]{0}', space=sflag, size = 0x4, scoped, tag = 'scoped memory for tpu_custom_call.1']
    #allocation10 [shape = 'u8[16384]{0}', space=vmem, size = 0x4000, scoped, tag = 'output window, operand 0']
    %11 = vsyncpa [#allocation3], 0
    %12 = vsyncpa [#allocation6], 0
    %13 = vsyncpa [#allocation9], 0
    %14 = vsyncpa [#allocation4], 0
    %s15 = scalar_lea.sflag [#allocation4], 1
    %16 = vsyncpa %s15, 0
    loop: start=0, step=1, limit=4
    $region2: #{tpu_custom_call.1} parent=1 // loop_pre_header
      _
    $region3: #{tpu_custom_call.1} parent=1 // loop_header
      %s18 = sphi 0, %s22
      %p19 = scmp.ge.s32.totalorder %s18, 4
      %s28 = sphi 0, %s30
      %s31 = sphi 0, %s28
      %s32 = sphi 0, %s31
      %s48 = sphi 0, %s32
      %s52 = sphi 0, %s52
      %s54 = sphi 0, %s52
      %s55 = sphi 0, %s54
      %s69 = sphi 0, %s55
      %s73 = sphi 0, %s73
      %s75 = sphi 0, %s73
      %s76 = sphi 0, %s75
      %s90 = sphi 0, %s76
      %s94 = sphi 0, %s94
      %s96 = sphi 0, %s94
      %s97 = sphi 0, %s96
      %s111 = sphi 0, %s97
      %s115 = sphi 0, %s115
      %s117 = sphi 0, %s115
      %s118 = sphi 0, %s117
      %s132 = sphi 0, %s118
      %s136 = sphi 0, %s136
      %s138 = sphi 0, %s136
      %s139 = sphi 0, %s138
      %s153 = sphi 0, %s139
      %s159 = sphi 0, %s161
      %s162 = sphi 0, %s159
      %s163 = sphi 0, %s162
      %s179 = sphi 0, %s163
    $region4: #{tpu_custom_call.1} parent=1 // loop_header_branch
      %21 = sbr.rel (%p19) target = $region8
    $region5: #{tpu_custom_call.1} parent=1 // loop_body
      %s23 = ssub.s32 %s18, 1
      %s24 = ssub.s32 %s18, 2
      %s25 = sadd.s32 %s18, 1
      %s26 = ssub.s32 %s18, %s25
      %p27 = scmp.eq.s32.totalorder %s26, 0
      %s29 = sadd.s32 %s28, 1
      %s30 = scalar_select %p27, %s28, %s29
      %p33 = pneg %p27
      %p34 = scmp.eq.s32.totalorder %s18, 1
      %p35 = por %p33, %p34
      %p36 = scmp.ne.s32.totalorder %s28, %s31
      %p37 = scmp.eq.s32.totalorder %s18, 0
      %p38 = por %p36, %p37
      %p39 = scmp.ne.s32.totalorder %s28, %s31
      %p40 = scmp.eq.s32.totalorder %s23, 1
      %p41 = por %p39, %p40
      %p42 = scmp.ne.s32.totalorder %s31, %s32
      %p43 = scmp.eq.s32.totalorder %s23, 0
      %p44 = por %p42, %p43
      %p45 = scmp.ne.s32.totalorder %s31, %s32
      %p46 = scmp.eq.s32.totalorder %s24, 1
      %p47 = por %p45, %p46
      %p49 = scmp.ne.s32.totalorder %s32, %s48
      %p50 = scmp.eq.s32.totalorder %s24, 0
      %p51 = por %p49, %p50
      %s53 = sadd.s32 %s52, 1
      %p56 = scmp.eq.s32.totalorder %s18, 1
      %p57 = scmp.ne.s32.totalorder %s52, %s54
      %p58 = scmp.eq.s32.totalorder %s18, 0
      %p59 = por %p57, %p58
      %p60 = scmp.ne.s32.totalorder %s52, %s54
      %p61 = scmp.eq.s32.totalorder %s23, 1
      %p62 = por %p60, %p61
      %p63 = scmp.ne.s32.totalorder %s54, %s55
      %p64 = scmp.eq.s32.totalorder %s23, 0
      %p65 = por %p63, %p64
      %p66 = scmp.ne.s32.totalorder %s54, %s55
      %p67 = scmp.eq.s32.totalorder %s24, 1
      %p68 = por %p66, %p67
      %p70 = scmp.ne.s32.totalorder %s55, %s69
      %p71 = scmp.eq.s32.totalorder %s24, 0
      %p72 = por %p70, %p71
      %s74 = sadd.s32 %s73, 1
      %p77 = scmp.eq.s32.totalorder %s18, 1
      %p78 = scmp.ne.s32.totalorder %s73, %s75
      %p79 = scmp.eq.s32.totalorder %s18, 0
      %p80 = por %p78, %p79
      %p81 = scmp.ne.s32.totalorder %s73, %s75
      %p82 = scmp.eq.s32.totalorder %s23, 1
      %p83 = por %p81, %p82
      %p84 = scmp.ne.s32.totalorder %s75, %s76
      %p85 = scmp.eq.s32.totalorder %s23, 0
      %p86 = por %p84, %p85
      %p87 = scmp.ne.s32.totalorder %s75, %s76
      %p88 = scmp.eq.s32.totalorder %s24, 1
      %p89 = por %p87, %p88
      %p91 = scmp.ne.s32.totalorder %s76, %s90
      %p92 = scmp.eq.s32.totalorder %s24, 0
      %p93 = por %p91, %p92
      %s95 = sadd.s32 %s94, 1
      %p98 = scmp.eq.s32.totalorder %s18, 1
      %p99 = scmp.ne.s32.totalorder %s94, %s96
      %p100 = scmp.eq.s32.totalorder %s18, 0
      %p101 = por %p99, %p100
      %p102 = scmp.ne.s32.totalorder %s94, %s96
      %p103 = scmp.eq.s32.totalorder %s23, 1
      %p104 = por %p102, %p103
      %p105 = scmp.ne.s32.totalorder %s96, %s97
      %p106 = scmp.eq.s32.totalorder %s23, 0
      %p107 = por %p105, %p106
      %p108 = scmp.ne.s32.totalorder %s96, %s97
      %p109 = scmp.eq.s32.totalorder %s24, 1
      %p110 = por %p108, %p109
      %p112 = scmp.ne.s32.totalorder %s97, %s111
      %p113 = scmp.eq.s32.totalorder %s24, 0
      %p114 = por %p112, %p113
      %s116 = sadd.s32 %s115, 1
      %p119 = scmp.eq.s32.totalorder %s18, 1
      %p120 = scmp.ne.s32.totalorder %s115, %s117
      %p121 = scmp.eq.s32.totalorder %s18, 0
      %p122 = por %p120, %p121
      %p123 = scmp.ne.s32.totalorder %s115, %s117
      %p124 = scmp.eq.s32.totalorder %s23, 1
      %p125 = por %p123, %p124
      %p126 = scmp.ne.s32.totalorder %s117, %s118
      %p127 = scmp.eq.s32.totalorder %s23, 0
      %p128 = por %p126, %p127
      %p129 = scmp.ne.s32.totalorder %s117, %s118
      %p130 = scmp.eq.s32.totalorder %s24, 1
      %p131 = por %p129, %p130
      %p133 = scmp.ne.s32.totalorder %s118, %s132
      %p134 = scmp.eq.s32.totalorder %s24, 0
      %p135 = por %p133, %p134
      %s137 = sadd.s32 %s136, 1
      %p140 = scmp.eq.s32.totalorder %s18, 1
      %p141 = scmp.ne.s32.totalorder %s136, %s138
      %p142 = scmp.eq.s32.totalorder %s18, 0
      %p143 = por %p141, %p142
      %p144 = scmp.ne.s32.totalorder %s136, %s138
      %p145 = scmp.eq.s32.totalorder %s23, 1
      %p146 = por %p144, %p145
      %p147 = scmp.ne.s32.totalorder %s138, %s139
      %p148 = scmp.eq.s32.totalorder %s23, 0
      %p149 = por %p147, %p148
      %p150 = scmp.ne.s32.totalorder %s138, %s139
      %p151 = scmp.eq.s32.totalorder %s24, 1
      %p152 = por %p150, %p151
      %p154 = scmp.ne.s32.totalorder %s139, %s153
      %p155 = scmp.eq.s32.totalorder %s24, 0
      %p156 = por %p154, %p155
      %s157 = ssub.s32 %s18, %s25
      %p158 = scmp.eq.s32.totalorder %s157, 0
      %s160 = sadd.s32 %s159, 1
      %s161 = scalar_select %p158, %s159, %s160
      %p164 = pneg %p158
      %p165 = scmp.eq.s32.totalorder %s18, 1
      %p166 = por %p164, %p165
      %p167 = scmp.ne.s32.totalorder %s159, %s162
      %p168 = scmp.eq.s32.totalorder %s18, 0
      %p169 = por %p167, %p168
      %p170 = scmp.ne.s32.totalorder %s159, %s162
      %p171 = scmp.eq.s32.totalorder %s23, 1
      %p172 = por %p170, %p171
      %p173 = scmp.ne.s32.totalorder %s162, %s163
      %p174 = scmp.eq.s32.totalorder %s23, 0
      %p175 = por %p173, %p174
      %p176 = scmp.ne.s32.totalorder %s162, %s163
      %p177 = scmp.eq.s32.totalorder %s24, 1
      %p178 = por %p176, %p177
      %p180 = scmp.ne.s32.totalorder %s163, %s179
      %p181 = scmp.eq.s32.totalorder %s24, 0
      %p182 = por %p180, %p181
      %p183 = scmp.le.s32.totalorder 1, %s18
      %p184 = scmp.lt.s32.totalorder %s18, 3
      %p185 = pnand %p183, %p184
      %p186 = pneg %p185
      // Predicated region
      $region9: #{tpu_custom_call.1} parent=5 // pred_check
        _
      $region10: #{tpu_custom_call.1} parent=5 // pred_check_branch
        %188 = sbr.rel (%p185) target = $region12
      $region11: #{tpu_custom_call.1} parent=5 // pred_region
        %s189 = ssub.s32 %s18, 1
        // Predicated region
        $region13: #{tpu_custom_call.1} parent=11 // pred_check
          %p190 = pneg %p65
        $region14: #{tpu_custom_call.1} parent=11 // pred_check_branch
          %192 = sbr.rel (%p190) target = $region16
        $region15: #{tpu_custom_call.1} parent=11 // pred_region
          %s194 = ssub.s32 2048, 2048
          %195 = vsyncadd [#allocation3], %s194
          %s196 = sshll.u32 [#allocation2], 4
          %s197 = int_to_ptr.vmem [resolvable:$true] %s196
          %202 = dma.hbm_to_vmem [thread:$0]  %s1, 2048, %s197, [#allocation3], 64, 64, 4
        $region16: #{tpu_custom_call.1} parent=11 // pred_fallthru
          _
        // Predicated region
        $region17: #{tpu_custom_call.1} parent=11 // pred_check
          %p203 = pneg %p86
        $region18: #{tpu_custom_call.1} parent=11 // pred_check_branch
          %205 = sbr.rel (%p203) target = $region20
        $region19: #{tpu_custom_call.1} parent=11 // pred_region
          %s207 = ssub.s32 9216, 9216
          %208 = vsyncadd [#allocation6], %s207
          %s209 = sshll.u32 [#allocation5], 4
          %s210 = int_to_ptr.vmem [resolvable:$true] %s209
          %215 = dma.hbm_to_vmem [thread:$0]  %s2, 9216, %s210, [#allocation6], 576, 576, 36
        $region20: #{tpu_custom_call.1} parent=11 // pred_fallthru
          _
        // Predicated region
        $region21: #{tpu_custom_call.1} parent=11 // pred_check
          %p216 = pneg %p107
        $region22: #{tpu_custom_call.1} parent=11 // pred_check_branch
          %218 = sbr.rel (%p216) target = $region24
        $region23: #{tpu_custom_call.1} parent=11 // pred_region
          _
        $region24: #{tpu_custom_call.1} parent=11 // pred_fallthru
          _
        // Predicated region
        $region25: #{tpu_custom_call.1} parent=11 // pred_check
          %p219 = pneg %p128
        $region26: #{tpu_custom_call.1} parent=11 // pred_check_branch
          %221 = sbr.rel (%p219) target = $region28
        $region27: #{tpu_custom_call.1} parent=11 // pred_region
          %s223 = ssub.s32 1024, 1024
          %224 = vsyncadd [#allocation6], %s223
          %s225 = sshll.u32 [#allocation7], 4
          %s226 = int_to_ptr.vmem [resolvable:$true] %s225
          %231 = dma.hbm_to_vmem [thread:$0]  %s4, 1024, %s226, [#allocation6], 64, 64, 4
        $region28: #{tpu_custom_call.1} parent=11 // pred_fallthru
          _
        // Predicated region
        $region29: #{tpu_custom_call.1} parent=11 // pred_check
          %p232 = pneg %p149
        $region30: #{tpu_custom_call.1} parent=11 // pred_check_branch
          %234 = sbr.rel (%p232) target = $region32
        $region31: #{tpu_custom_call.1} parent=11 // pred_region
          %s236 = ssub.s32 2048, 2048
          %237 = vsyncadd [#allocation9], %s236
          %s238 = sshll.u32 [#allocation8], 4
          %s239 = int_to_ptr.vmem [resolvable:$true] %s238
          %244 = dma.hbm_to_vmem [thread:$0]  %s5, 2048, %s239, [#allocation9], 128, 128, 8
        $region32: #{tpu_custom_call.1} parent=11 // pred_fallthru
          _
      $region12: #{tpu_custom_call.1} parent=5 // pred_fallthru
        _
      %p245 = scmp.lt.s32.totalorder %s18, 2
      // Predicated region
      $region33: #{tpu_custom_call.1} parent=5 // pred_check
        %p246 = pneg %p245
      $region34: #{tpu_custom_call.1} parent=5 // pred_check_branch
        %248 = sbr.rel (%p246) target = $region36
      $region35: #{tpu_custom_call.1} parent=5 // pred_region
        // Predicated region
        $region37: #{tpu_custom_call.1} parent=35 // pred_check
          %p249 = pneg %p38
        $region38: #{tpu_custom_call.1} parent=35 // pred_check_branch
          %251 = sbr.rel (%p249) target = $region40
        $region39: #{tpu_custom_call.1} parent=35 // pred_region
          %p252 = scmp.lt.s32.totalorder %s18, 1
          %s253 = scalar_select %p252, %s18, 1
          %s254 = smul.addr %s253, 2
          %s255 = smul.addr %s254, 4
          %s256 = scalar_lea.vmem %s0, %s255
        $region40: #{tpu_custom_call.1} parent=35 // pred_fallthru
          _
      $region36: #{tpu_custom_call.1} parent=5 // pred_fallthru
        _
      %p257 = scmp.le.s32.totalorder 1, %s18
      %p258 = scmp.lt.s32.totalorder %s18, 3
      %p259 = pnand %p257, %p258
      %p260 = pneg %p259
      // Predicated region
      $region41: #{tpu_custom_call.1} parent=5 // pred_check
        _
      $region42: #{tpu_custom_call.1} parent=5 // pred_check_branch
        %262 = sbr.rel (%p259) target = $region44
      $region43: #{tpu_custom_call.1} parent=5 // pred_region
        %s263 = ssub.s32 %s18, 1
        // Predicated region
        $region45: #{tpu_custom_call.1} parent=43 // pred_check
          %p264 = pneg %p65
        $region46: #{tpu_custom_call.1} parent=43 // pred_check_branch
          %266 = sbr.rel (%p264) target = $region48
        $region47: #{tpu_custom_call.1} parent=43 // pred_region
          %267 = dma.done [#allocation3], 2048
        $region48: #{tpu_custom_call.1} parent=43 // pred_fallthru
          _
        // Predicated region
        $region49: #{tpu_custom_call.1} parent=43 // pred_check
          %p268 = pneg %p86
        $region50: #{tpu_custom_call.1} parent=43 // pred_check_branch
          %270 = sbr.rel (%p268) target = $region52
        $region51: #{tpu_custom_call.1} parent=43 // pred_region
          %271 = dma.done [#allocation6], 9216
        $region52: #{tpu_custom_call.1} parent=43 // pred_fallthru
          _
        // Predicated region
        $region53: #{tpu_custom_call.1} parent=43 // pred_check
          %p272 = pneg %p128
        $region54: #{tpu_custom_call.1} parent=43 // pred_check_branch
          %274 = sbr.rel (%p272) target = $region56
        $region55: #{tpu_custom_call.1} parent=43 // pred_region
          %275 = dma.done [#allocation6], 1024
        $region56: #{tpu_custom_call.1} parent=43 // pred_fallthru
          _
        // Predicated region
        $region57: #{tpu_custom_call.1} parent=43 // pred_check
          %p276 = pneg %p149
        $region58: #{tpu_custom_call.1} parent=43 // pred_check_branch
          %278 = sbr.rel (%p276) target = $region60
        $region59: #{tpu_custom_call.1} parent=43 // pred_region
          %279 = dma.done [#allocation9], 2048
        $region60: #{tpu_custom_call.1} parent=43 // pred_fallthru
          _
        %p280 = scmp.lt.s32.totalorder %s23, 1
        %s281 = scalar_select %p280, %s23, 1
        %s282 = smul.addr %s281, 2
        %s283 = smul.addr %s282, 4
        %s284 = scalar_lea.vmem %s0, %s283
        %p285 = pneg %p44
        %p286 = pneg %p41
        %p287 = pneg %p65
        %p288 = pneg %p62
        %p289 = pneg %p86
        %p290 = pneg %p83
        %p291 = pneg %p107
        %p292 = pneg %p104
        %p293 = pneg %p128
        %p294 = pneg %p125
        %p295 = pneg %p149
        %p296 = pneg %p146
        %p297 = pneg %p175
        %p298 = pneg %p172
        %s299 = sand.u32 %s162, 1
        %s300 = scalar_lea.sflag [#allocation4], %s299
        %s301 = sand.u32 %s162, 1
        %s302 = smul.addr %s301, 16
        %s303 = scalar_lea.vmem [#allocation10], %s302
        %p304 = scmp.lt.s32.totalorder %s23, 1
        %s305 = scalar_select %p304, %s23, 1
        %s306 = smul.addr %s305, 2
        %s307 = smul.addr %s306, 4
        %s308 = scalar_lea.vmem %s0, %s307
        %v310 = vld [vmem:[%s308] sm:$0xff]
        %v311 = vld [vmem:[#allocation2] sm:$0xf]
        %v312 = vld [vmem:[#allocation2 + $0x4] sm:$0xf]
        %v313 = vld [vmem:[#allocation2 + $0x8] sm:$0xf]
        %v314 = vld [vmem:[#allocation2 + $0xc] sm:$0xf]
        %v315 = vld [vmem:[#allocation2 + $0x10] sm:$0xf]
        %v316 = vld [vmem:[#allocation2 + $0x14] sm:$0xf]
        %v317 = vld [vmem:[#allocation2 + $0x18] sm:$0xf]
        %v318 = vld [vmem:[#allocation2 + $0x1c] sm:$0xf]
        %v319 = vld [vmem:[#allocation2 + $0x20] sm:$0xf]
        %v320 = vld [vmem:[#allocation2 + $0x24] sm:$0xf]
        %v321 = vld [vmem:[#allocation2 + $0x28] sm:$0xf]
        %v322 = vld [vmem:[#allocation2 + $0x2c] sm:$0xf]
        %v323 = vld [vmem:[#allocation2 + $0x30] sm:$0xf]
        %v324 = vld [vmem:[#allocation2 + $0x34] sm:$0xf]
        %v325 = vld [vmem:[#allocation2 + $0x38] sm:$0xf]
        %v326 = vld [vmem:[#allocation2 + $0x3c] sm:$0xf]
        %v327 = vld [vmem:[#allocation2 + $0x40] sm:$0xf]
        %v328 = vld [vmem:[#allocation2 + $0x44] sm:$0xf]
        %v329 = vld [vmem:[#allocation2 + $0x48] sm:$0xf]
        %v330 = vld [vmem:[#allocation2 + $0x4c] sm:$0xf]
        %v331 = vld [vmem:[#allocation2 + $0x50] sm:$0xf]
        %v332 = vld [vmem:[#allocation2 + $0x54] sm:$0xf]
        %v333 = vld [vmem:[#allocation2 + $0x58] sm:$0xf]
        %v334 = vld [vmem:[#allocation2 + $0x5c] sm:$0xf]
        %v335 = vld [vmem:[#allocation2 + $0x60] sm:$0xf]
        %v336 = vld [vmem:[#allocation2 + $0x64] sm:$0xf]
        %v337 = vld [vmem:[#allocation2 + $0x68] sm:$0xf]
        %v338 = vld [vmem:[#allocation2 + $0x6c] sm:$0xf]
        %v339 = vld [vmem:[#allocation2 + $0x70] sm:$0xf]
        %v340 = vld [vmem:[#allocation2 + $0x74] sm:$0xf]
        %v341 = vld [vmem:[#allocation2 + $0x78] sm:$0xf]
        %v342 = vld [vmem:[#allocation2 + $0x7c] sm:$0xf]
        %v344 = vunpack.c.l.b16 %v310
        %v345 = vunpack.c.h.b16 %v310
        %v346 = vpack.c.b16 %v344, %v344
        %v347 = vpack.c.b16 %v345, %v345
        %v382 = vunpack.c.l.b16 %v311
        %v383 = vunpack.c.l.b16 %v312
        %v384 = vunpack.c.l.b16 %v313
        %v385 = vunpack.c.l.b16 %v314
        %v386 = vunpack.c.l.b16 %v315
        %v387 = vunpack.c.l.b16 %v316
        %v388 = vunpack.c.l.b16 %v317
        %v389 = vunpack.c.l.b16 %v318
        %v390 = vunpack.c.l.b16 %v319
        %v391 = vunpack.c.l.b16 %v320
        %v392 = vunpack.c.l.b16 %v321
        %v393 = vunpack.c.l.b16 %v322
        %v394 = vunpack.c.l.b16 %v323
        %v395 = vunpack.c.l.b16 %v324
        %v396 = vunpack.c.l.b16 %v325
        %v397 = vunpack.c.l.b16 %v326
        %v398 = vunpack.c.l.b16 %v327
        %v399 = vunpack.c.l.b16 %v328
        %v400 = vunpack.c.l.b16 %v329
        %v401 = vunpack.c.l.b16 %v330
        %v402 = vunpack.c.l.b16 %v331
        %v403 = vunpack.c.l.b16 %v332
        %v404 = vunpack.c.l.b16 %v333
        %v405 = vunpack.c.l.b16 %v334
        %v406 = vunpack.c.l.b16 %v335
        %v407 = vunpack.c.l.b16 %v336
        %v408 = vunpack.c.l.b16 %v337
        %v409 = vunpack.c.l.b16 %v338
        %v410 = vunpack.c.l.b16 %v339
        %v411 = vunpack.c.l.b16 %v340
        %v412 = vunpack.c.l.b16 %v341
        %v413 = vunpack.c.l.b16 %v342
        %v414 = vpack.c.b16 %v383, %v382
        %v415 = vpack.c.b16 %v385, %v384
        %v416 = vpack.c.b16 %v387, %v386
        %v417 = vpack.c.b16 %v389, %v388
        %v418 = vpack.c.b16 %v391, %v390
        %v419 = vpack.c.b16 %v393, %v392
        %v420 = vpack.c.b16 %v395, %v394
        %v421 = vpack.c.b16 %v397, %v396
        %v422 = vpack.c.b16 %v399, %v398
        %v423 = vpack.c.b16 %v401, %v400
        %v424 = vpack.c.b16 %v403, %v402
        %v425 = vpack.c.b16 %v405, %v404
        %v426 = vpack.c.b16 %v407, %v406
        %v427 = vpack.c.b16 %v409, %v408
        %v428 = vpack.c.b16 %v411, %v410
        %v429 = vpack.c.b16 %v413, %v412
        %446 = vmatprep.subr.bf16.mxu0 0
        %447 = vmatpush1.bf16.msra.mxu0 %v421
        %448 = vmatprep.subr.bf16.mxu0 0
        %449 = vmatpush1.bf16.msra.mxu0 %v420
        %450 = vmatprep.subr.bf16.mxu0 0
        %451 = vmatpush1.bf16.msra.mxu0 %v419
        %452 = vmatprep.subr.bf16.mxu0 0
        %453 = vmatpush1.bf16.msra.mxu0 %v418
        %454 = vmatprep.subr.bf16.mxu0 0
        %455 = vmatpush1.bf16.msra.mxu0 %v417
        %456 = vmatprep.subr.bf16.mxu0 0
        %457 = vmatpush1.bf16.msra.mxu0 %v416
        %458 = vmatprep.subr.bf16.mxu0 0
        %459 = vmatpush1.bf16.msra.mxu0 %v415
        %460 = vmatprep.subr.bf16.mxu0 0
        %461 = vmatpush1.bf16.msra.mxu0 %v414
        %462 = vmatprep.subr.bf16.mxu0 0
        %463 = vmatpush2.bf16.msra.mxu0 %v429
        %464 = vmatprep.subr.bf16.mxu0 0
        %465 = vmatpush2.bf16.msra.mxu0 %v428
        %466 = vmatprep.subr.bf16.mxu0 0
        %467 = vmatpush2.bf16.msra.mxu0 %v427
        %468 = vmatprep.subr.bf16.mxu0 0
        %469 = vmatpush2.bf16.msra.mxu0 %v426
        %470 = vmatprep.subr.bf16.mxu0 0
        %471 = vmatpush2.bf16.msra.mxu0 %v425
        %472 = vmatprep.subr.bf16.mxu0 0
        %473 = vmatpush2.bf16.msra.mxu0 %v424
        %474 = vmatprep.subr.bf16.mxu0 0
        %475 = vmatpush2.bf16.msra.mxu0 %v423
        %476 = vmatprep.subr.bf16.mxu0 0
        %477 = vmatpush2.bf16.msra.mxu0 %v422
        %478 = vmatprep.mubr.bf16.mxu0 %v347
        %479 = vmatmul.mubr.bf16.gmra.mxu0 %v346
        %v480 = vpop.f32.mrf.mxu0
        %v481 = vadd.f32 0.0, %v480
        %v482 = vpop.f32.mrf.mxu0
        %v483 = vpop.f32.mrf.mxu0
        %v484 = vpop.f32.mrf.mxu0
        %485 = vdwg.mxu0
        %v486 = vpack.c.bf16 %v481, %v481
        %v487 = vld [vmem:[#allocation5] sm:$0xff]
        %v488 = vld [vmem:[#allocation5 + $0x8] sm:$0xff]
        %v489 = vld [vmem:[#allocation5 + $0x10] sm:$0xff]
        %v490 = vld [vmem:[#allocation5 + $0x18] sm:$0xff]
        %v491 = vld [vmem:[#allocation5 + $0x20] sm:$0xf]
        %v492 = vld [vmem:[#allocation5 + $0x24] sm:$0xff]
        %v493 = vld [vmem:[#allocation5 + $0x2c] sm:$0xff]
        %v494 = vld [vmem:[#allocation5 + $0x34] sm:$0xff]
        %v495 = vld [vmem:[#allocation5 + $0x3c] sm:$0xff]
        %v496 = vld [vmem:[#allocation5 + $0x44] sm:$0xf]
        %v497 = vld [vmem:[#allocation5 + $0x48] sm:$0xff]
        %v498 = vld [vmem:[#allocation5 + $0x50] sm:$0xff]
        %v499 = vld [vmem:[#allocation5 + $0x58] sm:$0xff]
        %v500 = vld [vmem:[#allocation5 + $0x60] sm:$0xff]
        %v501 = vld [vmem:[#allocation5 + $0x68] sm:$0xf]
        %v502 = vld [vmem:[#allocation5 + $0x6c] sm:$0xff]
        %v503 = vld [vmem:[#allocation5 + $0x74] sm:$0xff]
        %v504 = vld [vmem:[#allocation5 + $0x7c] sm:$0xff]
        %v505 = vld [vmem:[#allocation5 + $0x84] sm:$0xff]
        %v506 = vld [vmem:[#allocation5 + $0x8c] sm:$0xf]
        %v507 = vld [vmem:[#allocation5 + $0x90] sm:$0xff]
        %v508 = vld [vmem:[#allocation5 + $0x98] sm:$0xff]
        %v509 = vld [vmem:[#allocation5 + $0xa0] sm:$0xff]
        %v510 = vld [vmem:[#allocation5 + $0xa8] sm:$0xff]
        %v511 = vld [vmem:[#allocation5 + $0xb0] sm:$0xf]
        %v512 = vld [vmem:[#allocation5 + $0xb4] sm:$0xff]
        %v513 = vld [vmem:[#allocation5 + $0xbc] sm:$0xff]
        %v514 = vld [vmem:[#allocation5 + $0xc4] sm:$0xff]
        %v515 = vld [vmem:[#allocation5 + $0xcc] sm:$0xff]
        %v516 = vld [vmem:[#allocation5 + $0xd4] sm:$0xf]
        %v517 = vld [vmem:[#allocation5 + $0xd8] sm:$0xff]
        %v518 = vld [vmem:[#allocation5 + $0xe0] sm:$0xff]
        %v519 = vld [vmem:[#allocation5 + $0xe8] sm:$0xff]
        %v520 = vld [vmem:[#allocation5 + $0xf0] sm:$0xff]
        %v521 = vld [vmem:[#allocation5 + $0xf8] sm:$0xf]
        %v522 = vld [vmem:[#allocation5 + $0xfc] sm:$0xff]
        %v523 = vld [vmem:[#allocation5 + $0x104] sm:$0xff]
        %v524 = vld [vmem:[#allocation5 + $0x10c] sm:$0xff]
        %v525 = vld [vmem:[#allocation5 + $0x114] sm:$0xff]
        %v526 = vld [vmem:[#allocation5 + $0x11c] sm:$0xf]
        %v527 = vld [vmem:[#allocation5 + $0x120] sm:$0xff]
        %v528 = vld [vmem:[#allocation5 + $0x128] sm:$0xff]
        %v529 = vld [vmem:[#allocation5 + $0x130] sm:$0xff]
        %v530 = vld [vmem:[#allocation5 + $0x138] sm:$0xff]
        %v531 = vld [vmem:[#allocation5 + $0x140] sm:$0xf]
        %v532 = vld [vmem:[#allocation5 + $0x144] sm:$0xff]
        %v533 = vld [vmem:[#allocation5 + $0x14c] sm:$0xff]
        %v534 = vld [vmem:[#allocation5 + $0x154] sm:$0xff]
        %v535 = vld [vmem:[#allocation5 + $0x15c] sm:$0xff]
        %v536 = vld [vmem:[#allocation5 + $0x164] sm:$0xf]
        %v537 = vld [vmem:[#allocation5 + $0x168] sm:$0xff]
        %v538 = vld [vmem:[#allocation5 + $0x170] sm:$0xff]
        %v539 = vld [vmem:[#allocation5 + $0x178] sm:$0xff]
        %v540 = vld [vmem:[#allocation5 + $0x180] sm:$0xff]
        %v541 = vld [vmem:[#allocation5 + $0x188] sm:$0xf]
        %v542 = vld [vmem:[#allocation5 + $0x18c] sm:$0xff]
        %v543 = vld [vmem:[#allocation5 + $0x194] sm:$0xff]
        %v544 = vld [vmem:[#allocation5 + $0x19c] sm:$0xff]
        %v545 = vld [vmem:[#allocation5 + $0x1a4] sm:$0xff]
        %v546 = vld [vmem:[#allocation5 + $0x1ac] sm:$0xf]
        %v547 = vld [vmem:[#allocation5 + $0x1b0] sm:$0xff]
        %v548 = vld [vmem:[#allocation5 + $0x1b8] sm:$0xff]
        %v549 = vld [vmem:[#allocation5 + $0x1c0] sm:$0xff]
        %v550 = vld [vmem:[#allocation5 + $0x1c8] sm:$0xff]
        %v551 = vld [vmem:[#allocation5 + $0x1d0] sm:$0xf]
        %v552 = vld [vmem:[#allocation5 + $0x1d4] sm:$0xff]
        %v553 = vld [vmem:[#allocation5 + $0x1dc] sm:$0xff]
        %v554 = vld [vmem:[#allocation5 + $0x1e4] sm:$0xff]
        %v555 = vld [vmem:[#allocation5 + $0x1ec] sm:$0xff]
        %v556 = vld [vmem:[#allocation5 + $0x1f4] sm:$0xf]
        %v557 = vld [vmem:[#allocation5 + $0x1f8] sm:$0xff]
        %v558 = vld [vmem:[#allocation5 + $0x200] sm:$0xff]
        %v559 = vld [vmem:[#allocation5 + $0x208] sm:$0xff]
        %v560 = vld [vmem:[#allocation5 + $0x210] sm:$0xff]
        %v561 = vld [vmem:[#allocation5 + $0x218] sm:$0xf]
        %v562 = vld [vmem:[#allocation5 + $0x21c] sm:$0xff]
        %v563 = vld [vmem:[#allocation5 + $0x224] sm:$0xff]
        %v564 = vld [vmem:[#allocation5 + $0x22c] sm:$0xff]
        %v565 = vld [vmem:[#allocation5 + $0x234] sm:$0xff]
        %v566 = vld [vmem:[#allocation5 + $0x23c] sm:$0xf]
        %v647 = vunpack.c.l.b16 %v487
        %v648 = vunpack.c.h.b16 %v487
        %v649 = vunpack.c.l.b16 %v488
        %v650 = vunpack.c.h.b16 %v488
        %v651 = vunpack.c.l.b16 %v489
        %v652 = vunpack.c.h.b16 %v489
        %v653 = vunpack.c.l.b16 %v490
        %v654 = vunpack.c.h.b16 %v490
        %v655 = vunpack.c.l.b16 %v491
        %v656 = vunpack.c.l.b16 %v492
        %v657 = vunpack.c.h.b16 %v492
        %v658 = vunpack.c.l.b16 %v493
        %v659 = vunpack.c.h.b16 %v493
        %v660 = vunpack.c.l.b16 %v494
        %v661 = vunpack.c.h.b16 %v494
        %v662 = vunpack.c.l.b16 %v495
        %v663 = vunpack.c.h.b16 %v495
        %v664 = vunpack.c.l.b16 %v496
        %v665 = vunpack.c.l.b16 %v497
        %v666 = vunpack.c.h.b16 %v497
        %v667 = vunpack.c.l.b16 %v498
        %v668 = vunpack.c.h.b16 %v498
        %v669 = vunpack.c.l.b16 %v499
        %v670 = vunpack.c.h.b16 %v499
        %v671 = vunpack.c.l.b16 %v500
        %v672 = vunpack.c.h.b16 %v500
        %v673 = vunpack.c.l.b16 %v501
        %v674 = vunpack.c.l.b16 %v502
        %v675 = vunpack.c.h.b16 %v502
        %v676 = vunpack.c.l.b16 %v503
        %v677 = vunpack.c.h.b16 %v503
        %v678 = vunpack.c.l.b16 %v504
        %v679 = vunpack.c.h.b16 %v504
        %v680 = vunpack.c.l.b16 %v505
        %v681 = vunpack.c.h.b16 %v505
        %v682 = vunpack.c.l.b16 %v506
        %v683 = vunpack.c.l.b16 %v507
        %v684 = vunpack.c.h.b16 %v507
        %v685 = vunpack.c.l.b16 %v508
        %v686 = vunpack.c.h.b16 %v508
        %v687 = vunpack.c.l.b16 %v509
        %v688 = vunpack.c.h.b16 %v509
        %v689 = vunpack.c.l.b16 %v510
        %v690 = vunpack.c.h.b16 %v510
        %v691 = vunpack.c.l.b16 %v511
        %v692 = vunpack.c.l.b16 %v512
        %v693 = vunpack.c.h.b16 %v512
        %v694 = vunpack.c.l.b16 %v513
        %v695 = vunpack.c.h.b16 %v513
        %v696 = vunpack.c.l.b16 %v514
        %v697 = vunpack.c.h.b16 %v514
        %v698 = vunpack.c.l.b16 %v515
        %v699 = vunpack.c.h.b16 %v515
        %v700 = vunpack.c.l.b16 %v516
        %v701 = vunpack.c.l.b16 %v517
        %v702 = vunpack.c.h.b16 %v517
        %v703 = vunpack.c.l.b16 %v518
        %v704 = vunpack.c.h.b16 %v518
        %v705 = vunpack.c.l.b16 %v519
        %v706 = vunpack.c.h.b16 %v519
        %v707 = vunpack.c.l.b16 %v520
        %v708 = vunpack.c.h.b16 %v520
        %v709 = vunpack.c.l.b16 %v521
        %v710 = vunpack.c.l.b16 %v522
        %v711 = vunpack.c.h.b16 %v522
        %v712 = vunpack.c.l.b16 %v523
        %v713 = vunpack.c.h.b16 %v523
        %v714 = vunpack.c.l.b16 %v524
        %v715 = vunpack.c.h.b16 %v524
        %v716 = vunpack.c.l.b16 %v525
        %v717 = vunpack.c.h.b16 %v525
        %v718 = vunpack.c.l.b16 %v526
        %v719 = vunpack.c.l.b16 %v527
        %v720 = vunpack.c.h.b16 %v527
        %v721 = vunpack.c.l.b16 %v528
        %v722 = vunpack.c.h.b16 %v528
        %v723 = vunpack.c.l.b16 %v529
        %v724 = vunpack.c.h.b16 %v529
        %v725 = vunpack.c.l.b16 %v530
        %v726 = vunpack.c.h.b16 %v530
        %v727 = vunpack.c.l.b16 %v531
        %v728 = vunpack.c.l.b16 %v532
        %v729 = vunpack.c.h.b16 %v532
        %v730 = vunpack.c.l.b16 %v533
        %v731 = vunpack.c.h.b16 %v533
        %v732 = vunpack.c.l.b16 %v534
        %v733 = vunpack.c.h.b16 %v534
        %v734 = vunpack.c.l.b16 %v535
        %v735 = vunpack.c.h.b16 %v535
        %v736 = vunpack.c.l.b16 %v536
        %v737 = vunpack.c.l.b16 %v537
        %v738 = vunpack.c.h.b16 %v537
        %v739 = vunpack.c.l.b16 %v538
        %v740 = vunpack.c.h.b16 %v538
        %v741 = vunpack.c.l.b16 %v539
        %v742 = vunpack.c.h.b16 %v539
        %v743 = vunpack.c.l.b16 %v540
        %v744 = vunpack.c.h.b16 %v540
        %v745 = vunpack.c.l.b16 %v541
        %v746 = vunpack.c.l.b16 %v542
        %v747 = vunpack.c.h.b16 %v542
        %v748 = vunpack.c.l.b16 %v543
        %v749 = vunpack.c.h.b16 %v543
        %v750 = vunpack.c.l.b16 %v544
        %v751 = vunpack.c.h.b16 %v544
        %v752 = vunpack.c.l.b16 %v545
        %v753 = vunpack.c.h.b16 %v545
        %v754 = vunpack.c.l.b16 %v546
        %v755 = vunpack.c.l.b16 %v547
        %v756 = vunpack.c.h.b16 %v547
        %v757 = vunpack.c.l.b16 %v548
        %v758 = vunpack.c.h.b16 %v548
        %v759 = vunpack.c.l.b16 %v549
        %v760 = vunpack.c.h.b16 %v549
        %v761 = vunpack.c.l.b16 %v550
        %v762 = vunpack.c.h.b16 %v550
        %v763 = vunpack.c.l.b16 %v551
        %v764 = vunpack.c.l.b16 %v552
        %v765 = vunpack.c.h.b16 %v552
        %v766 = vunpack.c.l.b16 %v553
        %v767 = vunpack.c.h.b16 %v553
        %v768 = vunpack.c.l.b16 %v554
        %v769 = vunpack.c.h.b16 %v554
        %v770 = vunpack.c.l.b16 %v555
        %v771 = vunpack.c.h.b16 %v555
        %v772 = vunpack.c.l.b16 %v556
        %v773 = vunpack.c.l.b16 %v557
        %v774 = vunpack.c.h.b16 %v557
        %v775 = vunpack.c.l.b16 %v558
        %v776 = vunpack.c.h.b16 %v558
        %v777 = vunpack.c.l.b16 %v559
        %v778 = vunpack.c.h.b16 %v559
        %v779 = vunpack.c.l.b16 %v560
        %v780 = vunpack.c.h.b16 %v560
        %v781 = vunpack.c.l.b16 %v561
        %v782 = vunpack.c.l.b16 %v562
        %v783 = vunpack.c.h.b16 %v562
        %v784 = vunpack.c.l.b16 %v563
        %v785 = vunpack.c.h.b16 %v563
        %v786 = vunpack.c.l.b16 %v564
        %v787 = vunpack.c.h.b16 %v564
        %v788 = vunpack.c.l.b16 %v565
        %v789 = vunpack.c.h.b16 %v565
        %v790 = vunpack.c.l.b16 %v566
        %v791 = vpack.c.b16 %v656, %v647
        %v792 = vpack.c.b16 %v657, %v648
        %v793 = vpack.c.b16 %v658, %v649
        %v794 = vpack.c.b16 %v659, %v650
        %v795 = vpack.c.b16 %v660, %v651
        %v796 = vpack.c.b16 %v661, %v652
        %v797 = vpack.c.b16 %v662, %v653
        %v798 = vpack.c.b16 %v663, %v654
        %v799 = vpack.c.b16 %v664, %v655
        %v800 = vpack.c.b16 %v674, %v665
        %v801 = vpack.c.b16 %v675, %v666
        %v802 = vpack.c.b16 %v676, %v667
        %v803 = vpack.c.b16 %v677, %v668
        %v804 = vpack.c.b16 %v678, %v669
        %v805 = vpack.c.b16 %v679, %v670
        %v806 = vpack.c.b16 %v680, %v671
        %v807 = vpack.c.b16 %v681, %v672
        %v808 = vpack.c.b16 %v682, %v673
        %v809 = vpack.c.b16 %v692, %v683
        %v810 = vpack.c.b16 %v693, %v684
        %v811 = vpack.c.b16 %v694, %v685
        %v812 = vpack.c.b16 %v695, %v686
        %v813 = vpack.c.b16 %v696, %v687
        %v814 = vpack.c.b16 %v697, %v688
        %v815 = vpack.c.b16 %v698, %v689
        %v816 = vpack.c.b16 %v699, %v690
        %v817 = vpack.c.b16 %v700, %v691
        %v818 = vpack.c.b16 %v710, %v701
        %v819 = vpack.c.b16 %v711, %v702
        %v820 = vpack.c.b16 %v712, %v703
        %v821 = vpack.c.b16 %v713, %v704
        %v822 = vpack.c.b16 %v714, %v705
        %v823 = vpack.c.b16 %v715, %v706
        %v824 = vpack.c.b16 %v716, %v707
        %v825 = vpack.c.b16 %v717, %v708
        %v826 = vpack.c.b16 %v718, %v709
        %v827 = vpack.c.b16 %v728, %v719
        %v828 = vpack.c.b16 %v729, %v720
        %v829 = vpack.c.b16 %v730, %v721
        %v830 = vpack.c.b16 %v731, %v722
        %v831 = vpack.c.b16 %v732, %v723
        %v832 = vpack.c.b16 %v733, %v724
        %v833 = vpack.c.b16 %v734, %v725
        %v834 = vpack.c.b16 %v735, %v726
        %v835 = vpack.c.b16 %v736, %v727
        %v836 = vpack.c.b16 %v746, %v737
        %v837 = vpack.c.b16 %v747, %v738
        %v838 = vpack.c.b16 %v748, %v739
        %v839 = vpack.c.b16 %v749, %v740
        %v840 = vpack.c.b16 %v750, %v741
        %v841 = vpack.c.b16 %v751, %v742
        %v842 = vpack.c.b16 %v752, %v743
        %v843 = vpack.c.b16 %v753, %v744
        %v844 = vpack.c.b16 %v754, %v745
        %v845 = vpack.c.b16 %v764, %v755
        %v846 = vpack.c.b16 %v765, %v756
        %v847 = vpack.c.b16 %v766, %v757
        %v848 = vpack.c.b16 %v767, %v758
        %v849 = vpack.c.b16 %v768, %v759
        %v850 = vpack.c.b16 %v769, %v760
        %v851 = vpack.c.b16 %v770, %v761
        %v852 = vpack.c.b16 %v771, %v762
        %v853 = vpack.c.b16 %v772, %v763
        %v854 = vpack.c.b16 %v782, %v773
        %v855 = vpack.c.b16 %v783, %v774
        %v856 = vpack.c.b16 %v784, %v775
        %v857 = vpack.c.b16 %v785, %v776
        %v858 = vpack.c.b16 %v786, %v777
        %v859 = vpack.c.b16 %v787, %v778
        %v860 = vpack.c.b16 %v788, %v779
        %v861 = vpack.c.b16 %v789, %v780
        %v862 = vpack.c.b16 %v790, %v781
        %935 = vmatprep.subr.bf16.mxu0 %v855
        %936 = vmatpush1.bf16.msra.mxu0 %v854
        %937 = vmatprep.subr.bf16.mxu0 %v846
        %938 = vmatpush1.bf16.msra.mxu0 %v845
        %939 = vmatprep.subr.bf16.mxu0 %v837
        %940 = vmatpush1.bf16.msra.mxu0 %v836
        %941 = vmatprep.subr.bf16.mxu0 %v828
        %942 = vmatpush1.bf16.msra.mxu0 %v827
        %943 = vmatprep.subr.bf16.mxu0 %v819
        %944 = vmatpush1.bf16.msra.mxu0 %v818
        %945 = vmatprep.subr.bf16.mxu0 %v810
        %946 = vmatpush1.bf16.msra.mxu0 %v809
        %947 = vmatprep.subr.bf16.mxu0 %v801
        %948 = vmatpush1.bf16.msra.mxu0 %v800
        %949 = vmatprep.subr.bf16.mxu0 %v792
        %950 = vmatpush1.bf16.msra.mxu0 %v791
        %951 = vmatprep.subr.bf16.mxu0 0
        %952 = vmatpush2.bf16.msra.mxu0 0
        %953 = vmatprep.subr.bf16.mxu0 0
        %954 = vmatpush2.bf16.msra.mxu0 0
        %955 = vmatprep.subr.bf16.mxu0 0
        %956 = vmatpush2.bf16.msra.mxu0 0
        %957 = vmatprep.subr.bf16.mxu0 0
        %958 = vmatpush2.bf16.msra.mxu0 0
        %959 = vmatprep.subr.bf16.mxu0 0
        %960 = vmatpush2.bf16.msra.mxu0 0
        %961 = vmatprep.subr.bf16.mxu0 0
        %962 = vmatpush2.bf16.msra.mxu0 0
        %963 = vmatprep.subr.bf16.mxu0 0
        %964 = vmatpush2.bf16.msra.mxu0 0
        %965 = vmatprep.subr.bf16.mxu0 0
        %966 = vmatpush2.bf16.msra.mxu0 0
        %967 = vmatprep.mubr.bf16.mxu0 0
        %968 = vmatmul.mubr.bf16.gmra.mxu0 %v486
        %v969 = vpop.f32.mrf.mxu0
        %v970 = vadd.f32 0.0, %v969
        %v971 = vpop.f32.mrf.mxu0
        %v972 = vadd.f32 0.0, %v971
        %v973 = vpop.f32.mrf.mxu0
        %v974 = vpop.f32.mrf.mxu0
        %975 = vdwg.mxu0
        %976 = vmatprep.subr.bf16.mxu0 %v857
        %977 = vmatpush1.bf16.msra.mxu0 %v856
        %978 = vmatprep.subr.bf16.mxu0 %v848
        %979 = vmatpush1.bf16.msra.mxu0 %v847
        %980 = vmatprep.subr.bf16.mxu0 %v839
        %981 = vmatpush1.bf16.msra.mxu0 %v838
        %982 = vmatprep.subr.bf16.mxu0 %v830
        %983 = vmatpush1.bf16.msra.mxu0 %v829
        %984 = vmatprep.subr.bf16.mxu0 %v821
        %985 = vmatpush1.bf16.msra.mxu0 %v820
        %986 = vmatprep.subr.bf16.mxu0 %v812
        %987 = vmatpush1.bf16.msra.mxu0 %v811
        %988 = vmatprep.subr.bf16.mxu0 %v803
        %989 = vmatpush1.bf16.msra.mxu0 %v802
        %990 = vmatprep.subr.bf16.mxu0 %v794
        %991 = vmatpush1.bf16.msra.mxu0 %v793
        %992 = vmatprep.subr.bf16.mxu0 0
        %993 = vmatpush2.bf16.msra.mxu0 0
        %994 = vmatprep.subr.bf16.mxu0 0
        %995 = vmatpush2.bf16.msra.mxu0 0
        %996 = vmatprep.subr.bf16.mxu0 0
        %997 = vmatpush2.bf16.msra.mxu0 0
        %998 = vmatprep.subr.bf16.mxu0 0
        %999 = vmatpush2.bf16.msra.mxu0 0
        %1000 = vmatprep.subr.bf16.mxu0 0
        %1001 = vmatpush2.bf16.msra.mxu0 0
        %1002 = vmatprep.subr.bf16.mxu0 0
        %1003 = vmatpush2.bf16.msra.mxu0 0
        %1004 = vmatprep.subr.bf16.mxu0 0
        %1005 = vmatpush2.bf16.msra.mxu0 0
        %1006 = vmatprep.subr.bf16.mxu0 0
        %1007 = vmatpush2.bf16.msra.mxu0 0
        %1008 = vmatprep.mubr.bf16.mxu0 0
        %1009 = vmatmul.mubr.bf16.gmra.mxu0 %v486
        %v1010 = vpop.f32.mrf.mxu0
        %v1011 = vadd.f32 0.0, %v1010
        %v1012 = vpop.f32.mrf.mxu0
        %v1013 = vadd.f32 0.0, %v1012
        %v1014 = vpop.f32.mrf.mxu0
        %v1015 = vpop.f32.mrf.mxu0
        %1016 = vdwg.mxu0
        %1017 = vmatprep.subr.bf16.mxu0 %v859
        %1018 = vmatpush1.bf16.msra.mxu0 %v858
        %1019 = vmatprep.subr.bf16.mxu0 %v850
        %1020 = vmatpush1.bf16.msra.mxu0 %v849
        %1021 = vmatprep.subr.bf16.mxu0 %v841
        %1022 = vmatpush1.bf16.msra.mxu0 %v840
        %1023 = vmatprep.subr.bf16.mxu0 %v832
        %1024 = vmatpush1.bf16.msra.mxu0 %v831
        %1025 = vmatprep.subr.bf16.mxu0 %v823
        %1026 = vmatpush1.bf16.msra.mxu0 %v822
        %1027 = vmatprep.subr.bf16.mxu0 %v814
        %1028 = vmatpush1.bf16.msra.mxu0 %v813
        %1029 = vmatprep.subr.bf16.mxu0 %v805
        %1030 = vmatpush1.bf16.msra.mxu0 %v804
        %1031 = vmatprep.subr.bf16.mxu0 %v796
        %1032 = vmatpush1.bf16.msra.mxu0 %v795
        %1033 = vmatprep.subr.bf16.mxu0 0
        %1034 = vmatpush2.bf16.msra.mxu0 0
        %1035 = vmatprep.subr.bf16.mxu0 0
        %1036 = vmatpush2.bf16.msra.mxu0 0
        %1037 = vmatprep.subr.bf16.mxu0 0
        %1038 = vmatpush2.bf16.msra.mxu0 0
        %1039 = vmatprep.subr.bf16.mxu0 0
        %1040 = vmatpush2.bf16.msra.mxu0 0
        %1041 = vmatprep.subr.bf16.mxu0 0
        %1042 = vmatpush2.bf16.msra.mxu0 0
        %1043 = vmatprep.subr.bf16.mxu0 0
        %1044 = vmatpush2.bf16.msra.mxu0 0
        %1045 = vmatprep.subr.bf16.mxu0 0
        %1046 = vmatpush2.bf16.msra.mxu0 0
        %1047 = vmatprep.subr.bf16.mxu0 0
        %1048 = vmatpush2.bf16.msra.mxu0 0
        %1049 = vmatprep.mubr.bf16.mxu0 0
        %1050 = vmatmul.mubr.bf16.gmra.mxu0 %v486
        %v1051 = vpop.f32.mrf.mxu0
        %v1052 = vadd.f32 0.0, %v1051
        %v1053 = vpop.f32.mrf.mxu0
        %v1054 = vadd.f32 0.0, %v1053
        %v1055 = vpop.f32.mrf.mxu0
        %v1056 = vpop.f32.mrf.mxu0
        %1057 = vdwg.mxu0
        %1058 = vmatprep.subr.bf16.mxu0 %v861
        %1059 = vmatpush1.bf16.msra.mxu0 %v860
        %1060 = vmatprep.subr.bf16.mxu0 %v852
        %1061 = vmatpush1.bf16.msra.mxu0 %v851
        %1062 = vmatprep.subr.bf16.mxu0 %v843
        %1063 = vmatpush1.bf16.msra.mxu0 %v842
        %1064 = vmatprep.subr.bf16.mxu0 %v834
        %1065 = vmatpush1.bf16.msra.mxu0 %v833
        %1066 = vmatprep.subr.bf16.mxu0 %v825
        %1067 = vmatpush1.bf16.msra.mxu0 %v824
        %1068 = vmatprep.subr.bf16.mxu0 %v816
        %1069 = vmatpush1.bf16.msra.mxu0 %v815
        %1070 = vmatprep.subr.bf16.mxu0 %v807
        %1071 = vmatpush1.bf16.msra.mxu0 %v806
        %1072 = vmatprep.subr.bf16.mxu0 %v798
        %1073 = vmatpush1.bf16.msra.mxu0 %v797
        %1074 = vmatprep.subr.bf16.mxu0 0
        %1075 = vmatpush2.bf16.msra.mxu0 0
        %1076 = vmatprep.subr.bf16.mxu0 0
        %1077 = vmatpush2.bf16.msra.mxu0 0
        %1078 = vmatprep.subr.bf16.mxu0 0
        %1079 = vmatpush2.bf16.msra.mxu0 0
        %1080 = vmatprep.subr.bf16.mxu0 0
        %1081 = vmatpush2.bf16.msra.mxu0 0
        %1082 = vmatprep.subr.bf16.mxu0 0
        %1083 = vmatpush2.bf16.msra.mxu0 0
        %1084 = vmatprep.subr.bf16.mxu0 0
        %1085 = vmatpush2.bf16.msra.mxu0 0
        %1086 = vmatprep.subr.bf16.mxu0 0
        %1087 = vmatpush2.bf16.msra.mxu0 0
        %1088 = vmatprep.subr.bf16.mxu0 0
        %1089 = vmatpush2.bf16.msra.mxu0 0
        %1090 = vmatprep.mubr.bf16.mxu0 0
        %1091 = vmatmul.mubr.bf16.gmra.mxu0 %v486
        %v1092 = vpop.f32.mrf.mxu0
        %v1093 = vadd.f32 0.0, %v1092
        %v1094 = vpop.f32.mrf.mxu0
        %v1095 = vadd.f32 0.0, %v1094
        %v1096 = vpop.f32.mrf.mxu0
        %v1097 = vpop.f32.mrf.mxu0
        %1098 = vdwg.mxu0
        %1099 = vmatprep.subr.bf16.mxu0 0
        %1100 = vmatpush1.bf16.msra.mxu0 %v862
        %1101 = vmatprep.subr.bf16.mxu0 0
        %1102 = vmatpush1.bf16.msra.mxu0 %v853
        %1103 = vmatprep.subr.bf16.mxu0 0
        %1104 = vmatpush1.bf16.msra.mxu0 %v844
        %1105 = vmatprep.subr.bf16.mxu0 0
        %1106 = vmatpush1.bf16.msra.mxu0 %v835
        %1107 = vmatprep.subr.bf16.mxu0 0
        %1108 = vmatpush1.bf16.msra.mxu0 %v826
        %1109 = vmatprep.subr.bf16.mxu0 0
        %1110 = vmatpush1.bf16.msra.mxu0 %v817
        %1111 = vmatprep.subr.bf16.mxu0 0
        %1112 = vmatpush1.bf16.msra.mxu0 %v808
        %1113 = vmatprep.subr.bf16.mxu0 0
        %1114 = vmatpush1.bf16.msra.mxu0 %v799
        %1115 = vmatprep.subr.bf16.mxu0 0
        %1116 = vmatpush2.bf16.msra.mxu0 0
        %1117 = vmatprep.subr.bf16.mxu0 0
        %1118 = vmatpush2.bf16.msra.mxu0 0
        %1119 = vmatprep.subr.bf16.mxu0 0
        %1120 = vmatpush2.bf16.msra.mxu0 0
        %1121 = vmatprep.subr.bf16.mxu0 0
        %1122 = vmatpush2.bf16.msra.mxu0 0
        %1123 = vmatprep.subr.bf16.mxu0 0
        %1124 = vmatpush2.bf16.msra.mxu0 0
        %1125 = vmatprep.subr.bf16.mxu0 0
        %1126 = vmatpush2.bf16.msra.mxu0 0
        %1127 = vmatprep.subr.bf16.mxu0 0
        %1128 = vmatpush2.bf16.msra.mxu0 0
        %1129 = vmatprep.subr.bf16.mxu0 0
        %1130 = vmatpush2.bf16.msra.mxu0 0
        %1131 = vmatprep.mubr.bf16.mxu0 0
        %1132 = vmatmul.mubr.bf16.gmra.mxu0 %v486
        %v1133 = vpop.f32.mrf.mxu0
        %v1134 = vadd.f32 0.0, %v1133
        %v1135 = vpop.f32.mrf.mxu0
        %v1136 = vpop.f32.mrf.mxu0
        %v1137 = vpop.f32.mrf.mxu0
        %1138 = vdwg.mxu0
        %v1139 = vmax.f32 %v970, %v972
        %v1140 = vmax.f32 %v1139, %v1011
        %v1141 = vmax.f32 %v1140, %v1013
        %v1142 = vmax.f32 %v1141, %v1052
        %v1143 = vmax.f32 %v1142, %v1054
        %v1144 = vmax.f32 %v1143, %v1093
        %v1145 = vmax.f32 %v1144, %v1095
        %v1146 = vmax.f32 %v1145, %v1134
        %v1147 = vpack.c.bf16 %v1146, %v1146
        %v1148 = vld [vmem:[%s3] sm:$0xf]
        %v1149 = vld [vmem:[%s3 + $0x4] sm:$0xf]
        %v1150 = vld [vmem:[%s3 + $0x8] sm:$0xf]
        %v1154 = vunpack.c.l.b16 %v1148
        %v1155 = vunpack.c.l.b16 %v1149
        %v1156 = vunpack.c.l.b16 %v1150
        %v1157 = vpack.c.b16 %v1155, %v1154
        %v1158 = vpack.c.b16 %v1156, %v1156
        %vm1159 = vcmask 64512
        %v1161 = vsel %vm1159, %v1157, 0
        %v1164 = vsel %vm1159, %v1158, 0
        %vm1166 = vcmask 1043456
        %v1168 = vsel %vm1166, %v1147, 0
        %1170 = vmatprep.subr.bf16.mxu0 0
        %1171 = vmatpush1.bf16.msra.mxu0 0
        %1172 = vmatprep.subr.bf16.mxu0 0
        %1173 = vmatpush1.bf16.msra.mxu0 0
        %1174 = vmatprep.subr.bf16.mxu0 0
        %1175 = vmatpush1.bf16.msra.mxu0 0
        %1176 = vmatprep.subr.bf16.mxu0 0
        %1177 = vmatpush1.bf16.msra.mxu0 0
        %1178 = vmatprep.subr.bf16.mxu0 0
        %1179 = vmatpush1.bf16.msra.mxu0 0
        %1180 = vmatprep.subr.bf16.mxu0 0
        %1181 = vmatpush1.bf16.msra.mxu0 0
        %1182 = vmatprep.subr.bf16.mxu0 0
        %1183 = vmatpush1.bf16.msra.mxu0 0
        %1184 = vmatprep.subr.bf16.mxu0 0
        %1185 = vmatpush1.bf16.msra.mxu0 %v1168
        %1186 = vmatprep.subr.bf16.mxu0 0
        %1187 = vmatpush2.bf16.msra.mxu0 0
        %1188 = vmatprep.subr.bf16.mxu0 0
        %1189 = vmatpush2.bf16.msra.mxu0 0
        %1190 = vmatprep.subr.bf16.mxu0 0
        %1191 = vmatpush2.bf16.msra.mxu0 0
        %1192 = vmatprep.subr.bf16.mxu0 0
        %1193 = vmatpush2.bf16.msra.mxu0 0
        %1194 = vmatprep.subr.bf16.mxu0 0
        %1195 = vmatpush2.bf16.msra.mxu0 0
        %1196 = vmatprep.subr.bf16.mxu0 0
        %1197 = vmatpush2.bf16.msra.mxu0 0
        %1198 = vmatprep.subr.bf16.mxu0 0
        %1199 = vmatpush2.bf16.msra.mxu0 0
        %1200 = vmatprep.subr.bf16.mxu0 0
        %1201 = vmatpush2.bf16.msra.mxu0 0
        %1202 = vmatprep.mubr.bf16.mxu0 0
        %1203 = vmatmul.mubr.bf16.gmra.mxu0 %v1161
        %v1204 = vpop.f32.mrf.mxu0
        %v1205 = vadd.f32 0.0, %v1204
        %v1206 = vpop.f32.mrf.mxu0
        %v1207 = vpop.f32.mrf.mxu0
        %v1208 = vadd.f32 0.0, %v1207
        %v1209 = vpop.f32.mrf.mxu0
        %1210 = vmatprep.mubr.bf16.mxu0 0
        %1211 = vmatmul.mubr.bf16.gmra.mxu0 %v1164
        %v1212 = vpop.f32.mrf.mxu0
        %v1213 = vadd.f32 0.0, %v1212
        %v1214 = vpop.f32.mrf.mxu0
        %v1215 = vpop.f32.mrf.mxu0
        %v1216 = vpop.f32.mrf.mxu0
        %1217 = vdwg.mxu0
        %v1218 = vpack.c.bf16 %v1205, %v1205
        %v1219 = vld [vmem:[#allocation7] sm:$0xf]
        %v1220 = vld [vmem:[#allocation7 + $0x4] sm:$0xf]
        %v1221 = vld [vmem:[#allocation7 + $0x8] sm:$0xf]
        %v1222 = vld [vmem:[#allocation7 + $0xc] sm:$0xf]
        %v1223 = vld [vmem:[#allocation7 + $0x10] sm:$0xf]
        %v1224 = vld [vmem:[#allocation7 + $0x14] sm:$0xf]
        %v1225 = vld [vmem:[#allocation7 + $0x18] sm:$0xf]
        %v1226 = vld [vmem:[#allocation7 + $0x1c] sm:$0xf]
        %v1227 = vld [vmem:[#allocation7 + $0x20] sm:$0xf]
        %v1228 = vld [vmem:[#allocation7 + $0x24] sm:$0xf]
        %v1229 = vld [vmem:[#allocation7 + $0x28] sm:$0xf]
        %v1230 = vld [vmem:[#allocation7 + $0x2c] sm:$0xf]
        %v1231 = vld [vmem:[#allocation7 + $0x30] sm:$0xf]
        %v1232 = vld [vmem:[#allocation7 + $0x34] sm:$0xf]
        %v1233 = vld [vmem:[#allocation7 + $0x38] sm:$0xf]
        %v1234 = vld [vmem:[#allocation7 + $0x3c] sm:$0xf]
        %v1251 = vunpack.c.l.b16 %v1219
        %v1252 = vunpack.c.l.b16 %v1220
        %v1253 = vunpack.c.l.b16 %v1221
        %v1254 = vunpack.c.l.b16 %v1222
        %v1255 = vunpack.c.l.b16 %v1223
        %v1256 = vunpack.c.l.b16 %v1224
        %v1257 = vunpack.c.l.b16 %v1225
        %v1258 = vunpack.c.l.b16 %v1226
        %v1259 = vunpack.c.l.b16 %v1227
        %v1260 = vunpack.c.l.b16 %v1228
        %v1261 = vunpack.c.l.b16 %v1229
        %v1262 = vunpack.c.l.b16 %v1230
        %v1263 = vunpack.c.l.b16 %v1231
        %v1264 = vunpack.c.l.b16 %v1232
        %v1265 = vunpack.c.l.b16 %v1233
        %v1266 = vunpack.c.l.b16 %v1234
        %v1267 = vpack.c.b16 %v1252, %v1251
        %v1268 = vpack.c.b16 %v1254, %v1253
        %v1269 = vpack.c.b16 %v1256, %v1255
        %v1270 = vpack.c.b16 %v1258, %v1257
        %v1271 = vpack.c.b16 %v1260, %v1259
        %v1272 = vpack.c.b16 %v1262, %v1261
        %v1273 = vpack.c.b16 %v1264, %v1263
        %v1274 = vpack.c.b16 %v1266, %v1265
        %1283 = vmatprep.subr.bf16.mxu0 0
        %1284 = vmatpush1.bf16.msra.mxu0 %v1274
        %1285 = vmatprep.subr.bf16.mxu0 0
        %1286 = vmatpush1.bf16.msra.mxu0 %v1273
        %1287 = vmatprep.subr.bf16.mxu0 0
        %1288 = vmatpush1.bf16.msra.mxu0 %v1272
        %1289 = vmatprep.subr.bf16.mxu0 0
        %1290 = vmatpush1.bf16.msra.mxu0 %v1271
        %1291 = vmatprep.subr.bf16.mxu0 0
        %1292 = vmatpush1.bf16.msra.mxu0 %v1270
        %1293 = vmatprep.subr.bf16.mxu0 0
        %1294 = vmatpush1.bf16.msra.mxu0 %v1269
        %1295 = vmatprep.subr.bf16.mxu0 0
        %1296 = vmatpush1.bf16.msra.mxu0 %v1268
        %1297 = vmatprep.subr.bf16.mxu0 0
        %1298 = vmatpush1.bf16.msra.mxu0 %v1267
        %1299 = vmatprep.subr.bf16.mxu0 0
        %1300 = vmatpush2.bf16.msra.mxu0 0
        %1301 = vmatprep.subr.bf16.mxu0 0
        %1302 = vmatpush2.bf16.msra.mxu0 0
        %1303 = vmatprep.subr.bf16.mxu0 0
        %1304 = vmatpush2.bf16.msra.mxu0 0
        %1305 = vmatprep.subr.bf16.mxu0 0
        %1306 = vmatpush2.bf16.msra.mxu0 0
        %1307 = vmatprep.subr.bf16.mxu0 0
        %1308 = vmatpush2.bf16.msra.mxu0 0
        %1309 = vmatprep.subr.bf16.mxu0 0
        %1310 = vmatpush2.bf16.msra.mxu0 0
        %1311 = vmatprep.subr.bf16.mxu0 0
        %1312 = vmatpush2.bf16.msra.mxu0 0
        %1313 = vmatprep.subr.bf16.mxu0 0
        %1314 = vmatpush2.bf16.msra.mxu0 0
        %1315 = vmatprep.mubr.bf16.mxu0 0
        %1316 = vmatmul.mubr.bf16.gmra.mxu0 %v1218
        %v1317 = vpop.f32.mrf.mxu0
        %v1318 = vadd.f32 0.0, %v1317
        %v1319 = vpop.f32.mrf.mxu0
        %v1320 = vpop.f32.mrf.mxu0
        %v1321 = vpop.f32.mrf.mxu0
        %1322 = vdwg.mxu0
        %v1323 = vmul.f32 %v1318, %v1208
        %v1324 = vlaneseq
        %v1325 = vshrl.u32 %v1324, 7
        %vm1326 = vcmp.lt.s32.totalorder %v1325, 4
        %v1327 = vsel %vm1326, 0.0, -1e+30
        %v1328 = vadd.f32 %v1323, %v1327
        %v1329 = vrot.slane %v1328, 4
        %v1330 = vmax.f32 %v1328, %v1329
        %v1331 = vrot.slane %v1330, 2
        %v1332 = vmax.f32 %v1330, %v1331
        %v1333 = vrot.slane %v1332, 1
        %v1334 = vmax.f32 %v1332, %v1333
        %v1335 = vsub.f32 %v1328, %v1334
        %v1336 = vmul.f32 %v1335, 1.442695
        %v1337 = vpow.pop %v1336
        %v1338 = vrot.slane %v1337, 4
        %v1339 = vadd.f32 %v1337, %v1338
        %v1340 = vrot.slane %v1339, 2
        %v1341 = vadd.f32 %v1339, %v1340
        %v1342 = vrot.slane %v1341, 1
        %v1343 = vadd.f32 %v1341, %v1342
        %v1344 = vrcp.pop %v1343
        %v1345 = vmul.f32 %v1337, %v1344
        %v1346 = vmul.f32 %v1213, %v1345
        %v1347 = vpack.c.bf16 %v1346, %v1346
        %v1348 = vld [vmem:[#allocation8] sm:$0xff]
        %v1349 = vld [vmem:[#allocation8 + $0x8] sm:$0xff]
        %v1350 = vld [vmem:[#allocation8 + $0x10] sm:$0xff]
        %v1351 = vld [vmem:[#allocation8 + $0x18] sm:$0xff]
        %v1352 = vld [vmem:[#allocation8 + $0x20] sm:$0xff]
        %v1353 = vld [vmem:[#allocation8 + $0x28] sm:$0xff]
        %v1354 = vld [vmem:[#allocation8 + $0x30] sm:$0xff]
        %v1355 = vld [vmem:[#allocation8 + $0x38] sm:$0xff]
        %v1356 = vld [vmem:[#allocation8 + $0x40] sm:$0xff]
        %v1357 = vld [vmem:[#allocation8 + $0x48] sm:$0xff]
        %v1358 = vld [vmem:[#allocation8 + $0x50] sm:$0xff]
        %v1359 = vld [vmem:[#allocation8 + $0x58] sm:$0xff]
        %v1360 = vld [vmem:[#allocation8 + $0x60] sm:$0xff]
        %v1361 = vld [vmem:[#allocation8 + $0x68] sm:$0xff]
        %v1362 = vld [vmem:[#allocation8 + $0x70] sm:$0xff]
        %v1363 = vld [vmem:[#allocation8 + $0x78] sm:$0xff]
        %v1380 = vunpack.c.l.b16 %v1348
        %v1381 = vunpack.c.h.b16 %v1348
        %v1382 = vunpack.c.l.b16 %v1349
        %v1383 = vunpack.c.h.b16 %v1349
        %v1384 = vunpack.c.l.b16 %v1350
        %v1385 = vunpack.c.h.b16 %v1350
        %v1386 = vunpack.c.l.b16 %v1351
        %v1387 = vunpack.c.h.b16 %v1351
        %v1388 = vunpack.c.l.b16 %v1352
        %v1389 = vunpack.c.h.b16 %v1352
        %v1390 = vunpack.c.l.b16 %v1353
        %v1391 = vunpack.c.h.b16 %v1353
        %v1392 = vunpack.c.l.b16 %v1354
        %v1393 = vunpack.c.h.b16 %v1354
        %v1394 = vunpack.c.l.b16 %v1355
        %v1395 = vunpack.c.h.b16 %v1355
        %v1396 = vunpack.c.l.b16 %v1356
        %v1397 = vunpack.c.h.b16 %v1356
        %v1398 = vunpack.c.l.b16 %v1357
        %v1399 = vunpack.c.h.b16 %v1357
        %v1400 = vunpack.c.l.b16 %v1358
        %v1401 = vunpack.c.h.b16 %v1358
        %v1402 = vunpack.c.l.b16 %v1359
        %v1403 = vunpack.c.h.b16 %v1359
        %v1404 = vunpack.c.l.b16 %v1360
        %v1405 = vunpack.c.h.b16 %v1360
        %v1406 = vunpack.c.l.b16 %v1361
        %v1407 = vunpack.c.h.b16 %v1361
        %v1408 = vunpack.c.l.b16 %v1362
        %v1409 = vunpack.c.h.b16 %v1362
        %v1410 = vunpack.c.l.b16 %v1363
        %v1411 = vunpack.c.h.b16 %v1363
        %v1412 = vpack.c.b16 %v1382, %v1380
        %v1413 = vpack.c.b16 %v1383, %v1381
        %v1414 = vpack.c.b16 %v1386, %v1384
        %v1415 = vpack.c.b16 %v1387, %v1385
        %v1416 = vpack.c.b16 %v1390, %v1388
        %v1417 = vpack.c.b16 %v1391, %v1389
        %v1418 = vpack.c.b16 %v1394, %v1392
        %v1419 = vpack.c.b16 %v1395, %v1393
        %v1420 = vpack.c.b16 %v1398, %v1396
        %v1421 = vpack.c.b16 %v1399, %v1397
        %v1422 = vpack.c.b16 %v1402, %v1400
        %v1423 = vpack.c.b16 %v1403, %v1401
        %v1424 = vpack.c.b16 %v1406, %v1404
        %v1425 = vpack.c.b16 %v1407, %v1405
        %v1426 = vpack.c.b16 %v1410, %v1408
        %v1427 = vpack.c.b16 %v1411, %v1409
        %1444 = vmatprep.subr.bf16.mxu0 %v1427
        %1445 = vmatpush1.bf16.msra.mxu0 %v1426
        %1446 = vmatprep.subr.bf16.mxu0 %v1425
        %1447 = vmatpush1.bf16.msra.mxu0 %v1424
        %1448 = vmatprep.subr.bf16.mxu0 %v1423
        %1449 = vmatpush1.bf16.msra.mxu0 %v1422
        %1450 = vmatprep.subr.bf16.mxu0 %v1421
        %1451 = vmatpush1.bf16.msra.mxu0 %v1420
        %1452 = vmatprep.subr.bf16.mxu0 %v1419
        %1453 = vmatpush1.bf16.msra.mxu0 %v1418
        %1454 = vmatprep.subr.bf16.mxu0 %v1417
        %1455 = vmatpush1.bf16.msra.mxu0 %v1416
        %1456 = vmatprep.subr.bf16.mxu0 %v1415
        %1457 = vmatpush1.bf16.msra.mxu0 %v1414
        %1458 = vmatprep.subr.bf16.mxu0 %v1413
        %1459 = vmatpush1.bf16.msra.mxu0 %v1412
        %1460 = vmatprep.subr.bf16.mxu0 0
        %1461 = vmatpush2.bf16.msra.mxu0 0
        %1462 = vmatprep.subr.bf16.mxu0 0
        %1463 = vmatpush2.bf16.msra.mxu0 0
        %1464 = vmatprep.subr.bf16.mxu0 0
        %1465 = vmatpush2.bf16.msra.mxu0 0
        %1466 = vmatprep.subr.bf16.mxu0 0
        %1467 = vmatpush2.bf16.msra.mxu0 0
        %1468 = vmatprep.subr.bf16.mxu0 0
        %1469 = vmatpush2.bf16.msra.mxu0 0
        %1470 = vmatprep.subr.bf16.mxu0 0
        %1471 = vmatpush2.bf16.msra.mxu0 0
        %1472 = vmatprep.subr.bf16.mxu0 0
        %1473 = vmatpush2.bf16.msra.mxu0 0
        %1474 = vmatprep.subr.bf16.mxu0 0
        %1475 = vmatpush2.bf16.msra.mxu0 0
        %1476 = vmatprep.mubr.bf16.mxu0 0
        %1477 = vmatmul.mubr.bf16.gmra.mxu0 %v1347
        %v1478 = vpop.f32.mrf.mxu0
        %v1479 = vadd.f32 0.0, %v1478
        %v1480 = vpop.f32.mrf.mxu0
        %v1481 = vadd.f32 0.0, %v1480
        %v1482 = vpop.f32.mrf.mxu0
        %v1483 = vpop.f32.mrf.mxu0
        %1484 = vdwg.mxu0
        %1485 = vst [vmem:[%s303] sm:$0xff] %v1479
        %1486 = vst [vmem:[%s303 + $0x8] sm:$0xff] %v1481
        %s1487 = sand.u32 %s162, 1
        %s1488 = scalar_lea.sflag [#allocation4], %s1487
        %s1489 = sand.u32 %s162, 1
        %s1490 = smul.addr %s1489, 16
        %s1491 = scalar_lea.vmem [#allocation10], %s1490
        // Predicated region
        $region61: #{tpu_custom_call.1} parent=43 // pred_check
          %p1492 = pneg %p172
        $region62: #{tpu_custom_call.1} parent=43 // pred_check_branch
          %1494 = sbr.rel (%p1492) target = $region64
        $region63: #{tpu_custom_call.1} parent=43 // pred_region
          %s1496 = ssub.s32 256, 256
          %1497 = vsyncadd %s1488, %s1496
          %s1498 = smul.addr %s23, 2
          %s1499 = smul.addr %s1498, 128
          %s1500 = scalar_lea.hbm %s6, %s1499
          %s1502 = sshll.u32 %s1491, 4
          %s1503 = int_to_ptr.vmem [resolvable:$true] %s1502
          %1505 = dma.vmem_to_hbm [thread:$0]  %s1503, 256, %s1500, %s1488
        $region64: #{tpu_custom_call.1} parent=43 // pred_fallthru
          _
      $region44: #{tpu_custom_call.1} parent=5 // pred_fallthru
        _
      %p1506 = scmp.le.s32.totalorder 2, %s18
      // Predicated region
      $region65: #{tpu_custom_call.1} parent=5 // pred_check
        %p1507 = pneg %p1506
      $region66: #{tpu_custom_call.1} parent=5 // pred_check_branch
        %1509 = sbr.rel (%p1507) target = $region68
      $region67: #{tpu_custom_call.1} parent=5 // pred_region
        %s1510 = ssub.s32 %s18, 2
        // Predicated region
        $region69: #{tpu_custom_call.1} parent=67 // pred_check
          %p1511 = pneg %p178
        $region70: #{tpu_custom_call.1} parent=67 // pred_check_branch
          %1513 = sbr.rel (%p1511) target = $region72
        $region71: #{tpu_custom_call.1} parent=67 // pred_region
          %s1514 = sand.u32 %s163, 1
          %s1515 = scalar_lea.sflag [#allocation4], %s1514
          %s1516 = sand.u32 %s163, 1
          %s1517 = smul.addr %s1516, 16
          %s1518 = scalar_lea.vmem [#allocation10], %s1517
          %1519 = dma.done %s1515, 256
        $region72: #{tpu_custom_call.1} parent=67 // pred_fallthru
          _
      $region68: #{tpu_custom_call.1} parent=5 // pred_fallthru
        _
    $region6: #{tpu_custom_call.1} parent=1 // loop_footer
      %s22 = sadd.s32 1, %s18
    $region7: #{tpu_custom_call.1} parent=1 // loop_footer_branch
      %17 = sbr.rel target = $region3
    $region8: #{tpu_custom_call.1} parent=1 // loop_exit
      _
    %1520 = vsyncpa [#allocation3], 1
    %s1521 = scalar_lea.sflag [#allocation3], 1
    %1522 = vsyncpa %s1521, 1
    %1523 = vsyncpa [#allocation6], 1
    %1524 = vsyncpa [#allocation9], 1
    %1525 = vsyncpa [#allocation4], 1
    %s1526 = scalar_lea.sflag [#allocation4], 1
    %1527 = vsyncpa %s1526, 1

// kernel: tpu_custom_call.1
$region0: #{tpu_custom_call.1}
  #allocation0 [shape = 'u32[]', space=smem, size = 0x4, offset = 0x4, fixed_abs, tag = 'smem constant byte address 0x4 - core index']
  #allocation1 [shape = 'u32[144,128]{1,0:T(1,128)}', space=vmem, size = 0x12000, scoped, tag = 'internal scratch']
  %s0 = inlined_call_operand.vmem [shape: bf16[16,256], index: 0, kind: input, shape index: {}]
  %s1 = inlined_call_operand.hbm [shape: bf16[256,128], index: 1, kind: input, shape index: {}]
  %s2 = inlined_call_operand.hbm [shape: bf16[128,1152], index: 2, kind: input, shape index: {}]
  %s3 = inlined_call_operand.vmem [shape: bf16[24,8], index: 3, kind: input, shape index: {}]
  %s4 = inlined_call_operand.hbm [shape: bf16[128,128], index: 4, kind: input, shape index: {}]
  %s5 = inlined_call_operand.hbm [shape: bf16[128,256], index: 5, kind: input, shape index: {}]
  %s6 = inlined_call_operand.hbm [shape: f32[16,256], index: 6, kind: output, shape index: {}]
  %s7 = sld [smem:[#allocation0]]
  $region73: #{tpu_custom_call.1} parent=0
    _
  %s9 = ssub.s32 1, %s7
  %s10 = scalar_select 0, %s9, %s7
  $region1: #{tpu_custom_call.1} parent=0
    #allocation2 [shape = 'u8[65536]{0}', space=vmem, size = 0x10000, scoped, tag = 'input window, operand 1, single buffered']
    #allocation3 [shape = 's32[2]{0}', space=sflag, size = 0x8, scoped, tag = 'scoped memory for tpu_custom_call.1']
    #allocation4 [shape = 's32[2]{0}', space=sflag, size = 0x8, scoped, tag = 'scoped memory for tpu_custom_call.1']
    #allocation5 [shape = 'u8[294912]{0}', space=vmem, size = 0x48000, scoped, tag = 'input window, operand 2, single buffered']
    #allocation6 [shape = 's32[1]{0}', space=sflag, size = 0x4, scoped, tag = 'scoped memory for tpu_custom_call.1']
    #allocation7 [shape = 'u8[32768]{0}', space=vmem, size = 0x8000, scoped, tag = 'input window, operand 4, single buffered']
    #allocation8 [shape = 'u8[65536]{0}', space=vmem, size = 0x10000, scoped, tag = 'input window, operand 5, single buffered']
    #allocation9 [shape = 's32[1]{0}', space=sflag, size = 0x4, scoped, tag = 'scoped memory for tpu_custom_call.1']
    #allocation10 [shape = 'u8[16384]{0}', space=vmem, size = 0x4000, scoped, tag = 'output window, operand 0']
    %11 = vsyncpa [#allocation3], 0
    %12 = vsyncpa [#allocation6], 0
    %13 = vsyncpa [#allocation9], 0
    %14 = vsyncpa [#allocation4], 0
    %s15 = scalar_lea.sflag [#allocation4], 1
    %16 = vsyncpa %s15, 0
    loop: start=0, step=1, limit=4
    $region2: #{tpu_custom_call.1} parent=1 // loop_pre_header
      _
    $region3: #{tpu_custom_call.1} parent=1 // loop_header
      %s18 = sphi 0, %s22
      %p19 = scmp.ge.s32.totalorder %s18, 4
      %s28 = sphi 0, %s30
      %s31 = sphi 0, %s28
      %s32 = sphi 0, %s31
      %s48 = sphi 0, %s32
      %s52 = sphi 0, %s52
      %s54 = sphi 0, %s52
      %s55 = sphi 0, %s54
      %s69 = sphi 0, %s55
      %s73 = sphi 0, %s73
      %s75 = sphi 0, %s73
      %s76 = sphi 0, %s75
      %s90 = sphi 0, %s76
      %s94 = sphi 0, %s94
      %s96 = sphi 0, %s94
      %s97 = sphi 0, %s96
      %s111 = sphi 0, %s97
      %s115 = sphi 0, %s115
      %s117 = sphi 0, %s115
      %s118 = sphi 0, %s117
      %s132 = sphi 0, %s118
      %s136 = sphi 0, %s136
      %s138 = sphi 0, %s136
      %s139 = sphi 0, %s138
      %s153 = sphi 0, %s139
      %s159 = sphi 0, %s161
      %s162 = sphi 0, %s159
      %s163 = sphi 0, %s162
      %s179 = sphi 0, %s163
    $region4: #{tpu_custom_call.1} parent=1 // loop_header_branch
      %21 = sbr.rel (%p19) target = $region8
    $region5: #{tpu_custom_call.1} parent=1 // loop_body
      %s23 = ssub.s32 %s18, 1
      %s24 = ssub.s32 %s18, 2
      %s25 = sadd.s32 %s18, 1
      %s26 = ssub.s32 %s18, %s25
      %p27 = scmp.eq.s32.totalorder %s26, 0
      %s29 = sadd.s32 %s28, 1
      %s30 = scalar_select %p27, %s28, %s29
      %p33 = pneg %p27
      %p34 = scmp.eq.s32.totalorder %s18, 1
      %p35 = por %p33, %p34
      %p36 = scmp.ne.s32.totalorder %s28, %s31
      %p37 = scmp.eq.s32.totalorder %s18, 0
      %p38 = por %p36, %p37
      %p39 = scmp.ne.s32.totalorder %s28, %s31
      %p40 = scmp.eq.s32.totalorder %s23, 1
      %p41 = por %p39, %p40
      %p42 = scmp.ne.s32.totalorder %s31, %s32
      %p43 = scmp.eq.s32.totalorder %s23, 0
      %p44 = por %p42, %p43
      %p45 = scmp.ne.s32.totalorder %s31, %s32
      %p46 = scmp.eq.s32.totalorder %s24, 1
      %p47 = por %p45, %p46
      %p49 = scmp.ne.s32.totalorder %s32, %s48
      %p50 = scmp.eq.s32.totalorder %s24, 0
      %p51 = por %p49, %p50
      %s53 = sadd.s32 %s52, 1
      %p56 = scmp.eq.s32.totalorder %s18, 1
      %p57 = scmp.ne.s32.totalorder %s52, %s54
      %p58 = scmp.eq.s32.totalorder %s18, 0
      %p59 = por %p57, %p58
      %p60 = scmp.ne.s32.totalorder %s52, %s54
      %p61 = scmp.eq.s32.totalorder %s23, 1
      %p62 = por %p60, %p61
      %p63 = scmp.ne.s32.totalorder %s54, %s55
      %p64 = scmp.eq.s32.totalorder %s23, 0
      %p65 = por %p63, %p64
      %p66 = scmp.ne.s32.totalorder %s54, %s55
      %p67 = scmp.eq.s32.totalorder %s24, 1
      %p68 = por %p66, %p67
      %p70 = scmp.ne.s32.totalorder %s55, %s69
      %p71 = scmp.eq.s32.totalorder %s24, 0
      %p72 = por %p70, %p71
      %s74 = sadd.s32 %s73, 1
      %p77 = scmp.eq.s32.totalorder %s18, 1
      %p78 = scmp.ne.s32.totalorder %s73, %s75
      %p79 = scmp.eq.s32.totalorder %s18, 0
      %p80 = por %p78, %p79
      %p81 = scmp.ne.s32.totalorder %s73, %s75
      %p82 = scmp.eq.s32.totalorder %s23, 1
      %p83 = por %p81, %p82
      %p84 = scmp.ne.s32.totalorder %s75, %s76
      %p85 = scmp.eq.s32.totalorder %s23, 0
      %p86 = por %p84, %p85
      %p87 = scmp.ne.s32.totalorder %s75, %s76
      %p88 = scmp.eq.s32.totalorder %s24, 1
      %p89 = por %p87, %p88
      %p91 = scmp.ne.s32.totalorder %s76, %s90
      %p92 = scmp.eq.s32.totalorder %s24, 0
      %p93 = por %p91, %p92
      %s95 = sadd.s32 %s94, 1
      %p98 = scmp.eq.s32.totalorder %s18, 1
      %p99 = scmp.ne.s32.totalorder %s94, %s96
      %p100 = scmp.eq.s32.totalorder %s18, 0
      %p101 = por %p99, %p100
      %p102 = scmp.ne.s32.totalorder %s94, %s96
      %p103 = scmp.eq.s32.totalorder %s23, 1
      %p104 = por %p102, %p103
      %p105 = scmp.ne.s32.totalorder %s96, %s97
      %p106 = scmp.eq.s32.totalorder %s23, 0
      %p107 = por %p105, %p106
      %p108 = scmp.ne.s32.totalorder %s96, %s97
      %p109 = scmp.eq.s32.totalorder %s24, 1
      %p110 = por %p108, %p109
      %p112 = scmp.ne.s32.totalorder %s97, %s111
      %p113 = scmp.eq.s32.totalorder %s24, 0
      %p114 = por %p112, %p113
      %s116 = sadd.s32 %s115, 1
      %p119 = scmp.eq.s32.totalorder %s18, 1
      %p120 = scmp.ne.s32.totalorder %s115, %s117
      %p121 = scmp.eq.s32.totalorder %s18, 0
      %p122 = por %p120, %p121
      %p123 = scmp.ne.s32.totalorder %s115, %s117
      %p124 = scmp.eq.s32.totalorder %s23, 1
      %p125 = por %p123, %p124
      %p126 = scmp.ne.s32.totalorder %s117, %s118
      %p127 = scmp.eq.s32.totalorder %s23, 0
      %p128 = por %p126, %p127
      %p129 = scmp.ne.s32.totalorder %s117, %s118
      %p130 = scmp.eq.s32.totalorder %s24, 1
      %p131 = por %p129, %p130
      %p133 = scmp.ne.s32.totalorder %s118, %s132
      %p134 = scmp.eq.s32.totalorder %s24, 0
      %p135 = por %p133, %p134
      %s137 = sadd.s32 %s136, 1
      %p140 = scmp.eq.s32.totalorder %s18, 1
      %p141 = scmp.ne.s32.totalorder %s136, %s138
      %p142 = scmp.eq.s32.totalorder %s18, 0
      %p143 = por %p141, %p142
      %p144 = scmp.ne.s32.totalorder %s136, %s138
      %p145 = scmp.eq.s32.totalorder %s23, 1
      %p146 = por %p144, %p145
      %p147 = scmp.ne.s32.totalorder %s138, %s139
      %p148 = scmp.eq.s32.totalorder %s23, 0
      %p149 = por %p147, %p148
      %p150 = scmp.ne.s32.totalorder %s138, %s139
      %p151 = scmp.eq.s32.totalorder %s24, 1
      %p152 = por %p150, %p151
      %p154 = scmp.ne.s32.totalorder %s139, %s153
      %p155 = scmp.eq.s32.totalorder %s24, 0
      %p156 = por %p154, %p155
      %s157 = ssub.s32 %s18, %s25
      %p158 = scmp.eq.s32.totalorder %s157, 0
      %s160 = sadd.s32 %s159, 1
      %s161 = scalar_select %p158, %s159, %s160
      %p164 = pneg %p158
      %p165 = scmp.eq.s32.totalorder %s18, 1
      %p166 = por %p164, %p165
      %p167 = scmp.ne.s32.totalorder %s159, %s162
      %p168 = scmp.eq.s32.totalorder %s18, 0
      %p169 = por %p167, %p168
      %p170 = scmp.ne.s32.totalorder %s159, %s162
      %p171 = scmp.eq.s32.totalorder %s23, 1
      %p172 = por %p170, %p171
      %p173 = scmp.ne.s32.totalorder %s162, %s163
      %p174 = scmp.eq.s32.totalorder %s23, 0
      %p175 = por %p173, %p174
      %p176 = scmp.ne.s32.totalorder %s162, %s163
      %p177 = scmp.eq.s32.totalorder %s24, 1
      %p178 = por %p176, %p177
      %p180 = scmp.ne.s32.totalorder %s163, %s179
      %p181 = scmp.eq.s32.totalorder %s24, 0
      %p182 = por %p180, %p181
      %p183 = scmp.le.s32.totalorder 1, %s18
      %p184 = scmp.lt.s32.totalorder %s18, 3
      %p185 = pnand %p183, %p184
      %p186 = pneg %p185
      // Predicated region
      $region9: #{tpu_custom_call.1} parent=5 // pred_check
        _
      $region10: #{tpu_custom_call.1} parent=5 // pred_check_branch
        %188 = sbr.rel (%p185) target = $region12
      $region11: #{tpu_custom_call.1} parent=5 // pred_region
        %s189 = ssub.s32 %s18, 1
        // Predicated region
        $region13: #{tpu_custom_call.1} parent=11 // pred_check
          %p190 = pneg %p65
        $region14: #{tpu_custom_call.1} parent=11 // pred_check_branch
          %192 = sbr.rel (%p190) target = $region16
        $region15: #{tpu_custom_call.1} parent=11 // pred_region
          %s194 = ssub.s32 2048, 2048
          %195 = vsyncadd [#allocation3], %s194
          %s196 = sshll.u32 [#allocation2], 4
          %s197 = int_to_ptr.vmem [resolvable:$true] %s196
          %202 = dma.hbm_to_vmem [thread:$0]  %s1, 2048, %s197, [#allocation3], 64, 64, 4
        $region16: #{tpu_custom_call.1} parent=11 // pred_fallthru
          _
        // Predicated region
        $region17: #{tpu_custom_call.1} parent=11 // pred_check
          %p203 = pneg %p86
        $region18: #{tpu_custom_call.1} parent=11 // pred_check_branch
          %205 = sbr.rel (%p203) target = $region20
        $region19: #{tpu_custom_call.1} parent=11 // pred_region
          %s207 = ssub.s32 9216, 9216
          %208 = vsyncadd [#allocation6], %s207
          %s209 = sshll.u32 [#allocation5], 4
          %s210 = int_to_ptr.vmem [resolvable:$true] %s209
          %215 = dma.hbm_to_vmem [thread:$0]  %s2, 9216, %s210, [#allocation6], 576, 576, 36
        $region20: #{tpu_custom_call.1} parent=11 // pred_fallthru
          _
        // Predicated region
        $region21: #{tpu_custom_call.1} parent=11 // pred_check
          %p216 = pneg %p107
        $region22: #{tpu_custom_call.1} parent=11 // pred_check_branch
          %218 = sbr.rel (%p216) target = $region24
        $region23: #{tpu_custom_call.1} parent=11 // pred_region
          _
        $region24: #{tpu_custom_call.1} parent=11 // pred_fallthru
          _
        // Predicated region
        $region25: #{tpu_custom_call.1} parent=11 // pred_check
          %p219 = pneg %p128
        $region26: #{tpu_custom_call.1} parent=11 // pred_check_branch
          %221 = sbr.rel (%p219) target = $region28
        $region27: #{tpu_custom_call.1} parent=11 // pred_region
          %s223 = ssub.s32 1024, 1024
          %224 = vsyncadd [#allocation6], %s223
          %s225 = sshll.u32 [#allocation7], 4
          %s226 = int_to_ptr.vmem [resolvable:$true] %s225
          %231 = dma.hbm_to_vmem [thread:$0]  %s4, 1024, %s226, [#allocation6], 64, 64, 4
        $region28: #{tpu_custom_call.1} parent=11 // pred_fallthru
          _
        // Predicated region
        $region29: #{tpu_custom_call.1} parent=11 // pred_check
          %p232 = pneg %p149
        $region30: #{tpu_custom_call.1} parent=11 // pred_check_branch
          %234 = sbr.rel (%p232) target = $region32
        $region31: #{tpu_custom_call.1} parent=11 // pred_region
          %s236 = ssub.s32 2048, 2048
          %237 = vsyncadd [#allocation9], %s236
          %s238 = sshll.u32 [#allocation8], 4
          %s239 = int_to_ptr.vmem [resolvable:$true] %s238
          %244 = dma.hbm_to_vmem [thread:$0]  %s5, 2048, %s239, [#allocation9], 128, 128, 8
        $region32: #{tpu_custom_call.1} parent=11 // pred_fallthru
          _
      $region12: #{tpu_custom_call.1} parent=5 // pred_fallthru
        _
      %p245 = scmp.lt.s32.totalorder %s18, 2
      // Predicated region
      $region33: #{tpu_custom_call.1} parent=5 // pred_check
        %p246 = pneg %p245
      $region34: #{tpu_custom_call.1} parent=5 // pred_check_branch
        %248 = sbr.rel (%p246) target = $region36
      $region35: #{tpu_custom_call.1} parent=5 // pred_region
        // Predicated region
        $region37: #{tpu_custom_call.1} parent=35 // pred_check
          %p249 = pneg %p38
        $region38: #{tpu_custom_call.1} parent=35 // pred_check_branch
          %251 = sbr.rel (%p249) target = $region40
        $region39: #{tpu_custom_call.1} parent=35 // pred_region
          %p252 = scmp.lt.s32.totalorder %s18, 1
          %s253 = scalar_select %p252, %s18, 1
          %s254 = smul.addr %s253, 2
          %s255 = smul.addr %s254, 4
          %s256 = scalar_lea.vmem %s0, %s255
        $region40: #{tpu_custom_call.1} parent=35 // pred_fallthru
          _
      $region36: #{tpu_custom_call.1} parent=5 // pred_fallthru
        _
      %p257 = scmp.le.s32.totalorder 1, %s18
      %p258 = scmp.lt.s32.totalorder %s18, 3
      %p259 = pnand %p257, %p258
      %p260 = pneg %p259
      // Predicated region
      $region41: #{tpu_custom_call.1} parent=5 // pred_check
        _
      $region42: #{tpu_custom_call.1} parent=5 // pred_check_branch
        %262 = sbr.rel (%p259) target = $region44
      $region43: #{tpu_custom_call.1} parent=5 // pred_region
        %s263 = ssub.s32 %s18, 1
        // Predicated region
        $region45: #{tpu_custom_call.1} parent=43 // pred_check
          %p264 = pneg %p65
        $region46: #{tpu_custom_call.1} parent=43 // pred_check_branch
          %266 = sbr.rel (%p264) target = $region48
        $region47: #{tpu_custom_call.1} parent=43 // pred_region
          %267 = dma.done [#allocation3], 2048
        $region48: #{tpu_custom_call.1} parent=43 // pred_fallthru
          _
        // Predicated region
        $region49: #{tpu_custom_call.1} parent=43 // pred_check
          %p268 = pneg %p86
        $region50: #{tpu_custom_call.1} parent=43 // pred_check_branch
          %270 = sbr.rel (%p268) target = $region52
        $region51: #{tpu_custom_call.1} parent=43 // pred_region
          %271 = dma.done [#allocation6], 9216
        $region52: #{tpu_custom_call.1} parent=43 // pred_fallthru
          _
        // Predicated region
        $region53: #{tpu_custom_call.1} parent=43 // pred_check
          %p272 = pneg %p128
        $region54: #{tpu_custom_call.1} parent=43 // pred_check_branch
          %274 = sbr.rel (%p272) target = $region56
        $region55: #{tpu_custom_call.1} parent=43 // pred_region
          %275 = dma.done [#allocation6], 1024
        $region56: #{tpu_custom_call.1} parent=43 // pred_fallthru
          _
        // Predicated region
        $region57: #{tpu_custom_call.1} parent=43 // pred_check
          %p276 = pneg %p149
        $region58: #{tpu_custom_call.1} parent=43 // pred_check_branch
          %278 = sbr.rel (%p276) target = $region60
        $region59: #{tpu_custom_call.1} parent=43 // pred_region
          %279 = dma.done [#allocation9], 2048
        $region60: #{tpu_custom_call.1} parent=43 // pred_fallthru
          _
        %p280 = scmp.lt.s32.totalorder %s23, 1
        %s281 = scalar_select %p280, %s23, 1
        %s282 = smul.addr %s281, 2
        %s283 = smul.addr %s282, 4
        %s284 = scalar_lea.vmem %s0, %s283
        %p285 = pneg %p44
        %p286 = pneg %p41
        %p287 = pneg %p65
        %p288 = pneg %p62
        %p289 = pneg %p86
        %p290 = pneg %p83
        %p291 = pneg %p107
        %p292 = pneg %p104
        %p293 = pneg %p128
        %p294 = pneg %p125
        %p295 = pneg %p149
        %p296 = pneg %p146
        %p297 = pneg %p175
        %p298 = pneg %p172
        %s299 = sand.u32 %s162, 1
        %s300 = scalar_lea.sflag [#allocation4], %s299
        %s301 = sand.u32 %s162, 1
        %s302 = smul.addr %s301, 16
        %s303 = scalar_lea.vmem [#allocation10], %s302
        %p304 = scmp.lt.s32.totalorder %s23, 1
        %s305 = scalar_select %p304, %s23, 1
        %s306 = smul.addr %s305, 2
        %s307 = smul.addr %s306, 4
        %s308 = scalar_lea.vmem %s0, %s307
        %v310 = vld [vmem:[%s308] sm:$0xff]
        %v311 = vld [vmem:[#allocation2] sm:$0xf]
        %v312 = vld [vmem:[#allocation2 + $0x4] sm:$0xf]
        %v313 = vld [vmem:[#allocation2 + $0x8] sm:$0xf]
        %v314 = vld [vmem:[#allocation2 + $0xc] sm:$0xf]
        %v315 = vld [vmem:[#allocation2 + $0x10] sm:$0xf]
        %v316 = vld [vmem:[#allocation2 + $0x14] sm:$0xf]
        %v317 = vld [vmem:[#allocation2 + $0x18] sm:$0xf]
        %v318 = vld [vmem:[#allocation2 + $0x1c] sm:$0xf]
        %v319 = vld [vmem:[#allocation2 + $0x20] sm:$0xf]
        %v320 = vld [vmem:[#allocation2 + $0x24] sm:$0xf]
        %v321 = vld [vmem:[#allocation2 + $0x28] sm:$0xf]
        %v322 = vld [vmem:[#allocation2 + $0x2c] sm:$0xf]
        %v323 = vld [vmem:[#allocation2 + $0x30] sm:$0xf]
        %v324 = vld [vmem:[#allocation2 + $0x34] sm:$0xf]
        %v325 = vld [vmem:[#allocation2 + $0x38] sm:$0xf]
        %v326 = vld [vmem:[#allocation2 + $0x3c] sm:$0xf]
        %v327 = vld [vmem:[#allocation2 + $0x40] sm:$0xf]
        %v328 = vld [vmem:[#allocation2 + $0x44] sm:$0xf]
        %v329 = vld [vmem:[#allocation2 + $0x48] sm:$0xf]
        %v330 = vld [vmem:[#allocation2 + $0x4c] sm:$0xf]
        %v331 = vld [vmem:[#allocation2 + $0x50] sm:$0xf]
        %v332 = vld [vmem:[#allocation2 + $0x54] sm:$0xf]
        %v333 = vld [vmem:[#allocation2 + $0x58] sm:$0xf]
        %v334 = vld [vmem:[#allocation2 + $0x5c] sm:$0xf]
        %v335 = vld [vmem:[#allocation2 + $0x60] sm:$0xf]
        %v336 = vld [vmem:[#allocation2 + $0x64] sm:$0xf]
        %v337 = vld [vmem:[#allocation2 + $0x68] sm:$0xf]
        %v338 = vld [vmem:[#allocation2 + $0x6c] sm:$0xf]
        %v339 = vld [vmem:[#allocation2 + $0x70] sm:$0xf]
        %v340 = vld [vmem:[#allocation2 + $0x74] sm:$0xf]
        %v341 = vld [vmem:[#allocation2 + $0x78] sm:$0xf]
        %v342 = vld [vmem:[#allocation2 + $0x7c] sm:$0xf]
        %v344 = vunpack.c.l.b16 %v310
        %v345 = vunpack.c.h.b16 %v310
        %v346 = vpack.c.b16 %v344, %v344
        %v347 = vpack.c.b16 %v345, %v345
        %v382 = vunpack.c.l.b16 %v311
        %v383 = vunpack.c.l.b16 %v312
        %v384 = vunpack.c.l.b16 %v313
        %v385 = vunpack.c.l.b16 %v314
        %v386 = vunpack.c.l.b16 %v315
        %v387 = vunpack.c.l.b16 %v316
        %v388 = vunpack.c.l.b16 %v317
        %v389 = vunpack.c.l.b16 %v318
        %v390 = vunpack.c.l.b16 %v319
        %v391 = vunpack.c.l.b16 %v320
        %v392 = vunpack.c.l.b16 %v321
        %v393 = vunpack.c.l.b16 %v322
        %v394 = vunpack.c.l.b16 %v323
        %v395 = vunpack.c.l.b16 %v324
        %v396 = vunpack.c.l.b16 %v325
        %v397 = vunpack.c.l.b16 %v326
        %v398 = vunpack.c.l.b16 %v327
        %v399 = vunpack.c.l.b16 %v328
        %v400 = vunpack.c.l.b16 %v329
        %v401 = vunpack.c.l.b16 %v330
        %v402 = vunpack.c.l.b16 %v331
        %v403 = vunpack.c.l.b16 %v332
        %v404 = vunpack.c.l.b16 %v333
        %v405 = vunpack.c.l.b16 %v334
        %v406 = vunpack.c.l.b16 %v335
        %v407 = vunpack.c.l.b16 %v336
        %v408 = vunpack.c.l.b16 %v337
        %v409 = vunpack.c.l.b16 %v338
        %v410 = vunpack.c.l.b16 %v339
        %v411 = vunpack.c.l.b16 %v340
        %v412 = vunpack.c.l.b16 %v341
        %v413 = vunpack.c.l.b16 %v342
        %v414 = vpack.c.b16 %v383, %v382
        %v415 = vpack.c.b16 %v385, %v384
        %v416 = vpack.c.b16 %v387, %v386
        %v417 = vpack.c.b16 %v389, %v388
        %v418 = vpack.c.b16 %v391, %v390
        %v419 = vpack.c.b16 %v393, %v392
        %v420 = vpack.c.b16 %v395, %v394
        %v421 = vpack.c.b16 %v397, %v396
        %v422 = vpack.c.b16 %v399, %v398
        %v423 = vpack.c.b16 %v401, %v400
        %v424 = vpack.c.b16 %v403, %v402
        %v425 = vpack.c.b16 %v405, %v404
        %v426 = vpack.c.b16 %v407, %v406
        %v427 = vpack.c.b16 %v409, %v408
        %v428 = vpack.c.b16 %v411, %v410
        %v429 = vpack.c.b16 %v413, %v412
        %446 = vmatprep.subr.bf16.mxu0 0
        %447 = vmatpush1.bf16.msra.mxu0 %v421
        %448 = vmatprep.subr.bf16.mxu0 0
        %449 = vmatpush1.bf16.msra.mxu0 %v420
        %450 = vmatprep.subr.bf16.mxu0 0
        %451 = vmatpush1.bf16.msra.mxu0 %v419
        %452 = vmatprep.subr.bf16.mxu0 0
        %453 = vmatpush1.bf16.msra.mxu0 %v418
        %454 = vmatprep.subr.bf16.mxu0 0
        %455 = vmatpush1.bf16.msra.mxu0 %v417
        %456 = vmatprep.subr.bf16.mxu0 0
        %457 = vmatpush1.bf16.msra.mxu0 %v416
        %458 = vmatprep.subr.bf16.mxu0 0
        %459 = vmatpush1.bf16.msra.mxu0 %v415
        %460 = vmatprep.subr.bf16.mxu0 0
        %461 = vmatpush1.bf16.msra.mxu0 %v414
        %462 = vmatprep.subr.bf16.mxu0 0
        %463 = vmatpush2.bf16.msra.mxu0 %v429
        %464 = vmatprep.subr.bf16.mxu0 0
        %465 = vmatpush2.bf16.msra.mxu0 %v428
        %466 = vmatprep.subr.bf16.mxu0 0
        %467 = vmatpush2.bf16.msra.mxu0 %v427
        %468 = vmatprep.subr.bf16.mxu0 0
        %469 = vmatpush2.bf16.msra.mxu0 %v426
        %470 = vmatprep.subr.bf16.mxu0 0
        %471 = vmatpush2.bf16.msra.mxu0 %v425
        %472 = vmatprep.subr.bf16.mxu0 0
        %473 = vmatpush2.bf16.msra.mxu0 %v424
        %474 = vmatprep.subr.bf16.mxu0 0
        %475 = vmatpush2.bf16.msra.mxu0 %v423
        %476 = vmatprep.subr.bf16.mxu0 0
        %477 = vmatpush2.bf16.msra.mxu0 %v422
        %478 = vmatprep.mubr.bf16.mxu0 %v347
        %479 = vmatmul.mubr.bf16.gmra.mxu0 %v346
        %v480 = vpop.f32.mrf.mxu0
        %v481 = vadd.f32 0.0, %v480
        %v482 = vpop.f32.mrf.mxu0
        %v483 = vpop.f32.mrf.mxu0
        %v484 = vpop.f32.mrf.mxu0
        %485 = vdwg.mxu0
        %v486 = vpack.c.bf16 %v481, %v481
        %v487 = vld [vmem:[#allocation5] sm:$0xff]
        %v488 = vld [vmem:[#allocation5 + $0x8] sm:$0xff]
        %v489 = vld [vmem:[#allocation5 + $0x10] sm:$0xff]
        %v490 = vld [vmem:[#allocation5 + $0x18] sm:$0xff]
        %v491 = vld [vmem:[#allocation5 + $0x20] sm:$0xf]
        %v492 = vld [vmem:[#allocation5 + $0x24] sm:$0xff]
        %v493 = vld [vmem:[#allocation5 + $0x2c] sm:$0xff]
        %v494 = vld [vmem:[#allocation5 + $0x34] sm:$0xff]
        %v495 = vld [vmem:[#allocation5 + $0x3c] sm:$0xff]
        %v496 = vld [vmem:[#allocation5 + $0x44] sm:$0xf]
        %v497 = vld [vmem:[#allocation5 + $0x48] sm:$0xff]
        %v498 = vld [vmem:[#allocation5 + $0x50] sm:$0xff]
        %v499 = vld [vmem:[#allocation5 + $0x58] sm:$0xff]
        %v500 = vld [vmem:[#allocation5 + $0x60] sm:$0xff]
        %v501 = vld [vmem:[#allocation5 + $0x68] sm:$0xf]
        %v502 = vld [vmem:[#allocation5 + $0x6c] sm:$0xff]
        %v503 = vld [vmem:[#allocation5 + $0x74] sm:$0xff]
        %v504 = vld [vmem:[#allocation5 + $0x7c] sm:$0xff]
        %v505 = vld [vmem:[#allocation5 + $0x84] sm:$0xff]
        %v506 = vld [vmem:[#allocation5 + $0x8c] sm:$0xf]
        %v507 = vld [vmem:[#allocation5 + $0x90] sm:$0xff]
        %v508 = vld [vmem:[#allocation5 + $0x98] sm:$0xff]
        %v509 = vld [vmem:[#allocation5 + $0xa0] sm:$0xff]
        %v510 = vld [vmem:[#allocation5 + $0xa8] sm:$0xff]
        %v511 = vld [vmem:[#allocation5 + $0xb0] sm:$0xf]
        %v512 = vld [vmem:[#allocation5 + $0xb4] sm:$0xff]
        %v513 = vld [vmem:[#allocation5 + $0xbc] sm:$0xff]
        %v514 = vld [vmem:[#allocation5 + $0xc4] sm:$0xff]
        %v515 = vld [vmem:[#allocation5 + $0xcc] sm:$0xff]
        %v516 = vld [vmem:[#allocation5 + $0xd4] sm:$0xf]
        %v517 = vld [vmem:[#allocation5 + $0xd8] sm:$0xff]
        %v518 = vld [vmem:[#allocation5 + $0xe0] sm:$0xff]
        %v519 = vld [vmem:[#allocation5 + $0xe8] sm:$0xff]
        %v520 = vld [vmem:[#allocation5 + $0xf0] sm:$0xff]
        %v521 = vld [vmem:[#allocation5 + $0xf8] sm:$0xf]
        %v522 = vld [vmem:[#allocation5 + $0xfc] sm:$0xff]
        %v523 = vld [vmem:[#allocation5 + $0x104] sm:$0xff]
        %v524 = vld [vmem:[#allocation5 + $0x10c] sm:$0xff]
        %v525 = vld [vmem:[#allocation5 + $0x114] sm:$0xff]
        %v526 = vld [vmem:[#allocation5 + $0x11c] sm:$0xf]
        %v527 = vld [vmem:[#allocation5 + $0x120] sm:$0xff]
        %v528 = vld [vmem:[#allocation5 + $0x128] sm:$0xff]
        %v529 = vld [vmem:[#allocation5 + $0x130] sm:$0xff]
        %v530 = vld [vmem:[#allocation5 + $0x138] sm:$0xff]
        %v531 = vld [vmem:[#allocation5 + $0x140] sm:$0xf]
        %v532 = vld [vmem:[#allocation5 + $0x144] sm:$0xff]
        %v533 = vld [vmem:[#allocation5 + $0x14c] sm:$0xff]
        %v534 = vld [vmem:[#allocation5 + $0x154] sm:$0xff]
        %v535 = vld [vmem:[#allocation5 + $0x15c] sm:$0xff]
        %v536 = vld [vmem:[#allocation5 + $0x164] sm:$0xf]
        %v537 = vld [vmem:[#allocation5 + $0x168] sm:$0xff]
        %v538 = vld [vmem:[#allocation5 + $0x170] sm:$0xff]
        %v539 = vld [vmem:[#allocation5 + $0x178] sm:$0xff]
        %v540 = vld [vmem:[#allocation5 + $0x180] sm:$0xff]
        %v541 = vld [vmem:[#allocation5 + $0x188] sm:$0xf]
        %v542 = vld [vmem:[#allocation5 + $0x18c] sm:$0xff]
        %v543 = vld [vmem:[#allocation5 + $0x194] sm:$0xff]
        %v544 = vld [vmem:[#allocation5 + $0x19c] sm:$0xff]
        %v545 = vld [vmem:[#allocation5 + $0x1a4] sm:$0xff]
        %v546 = vld [vmem:[#allocation5 + $0x1ac] sm:$0xf]
        %v547 = vld [vmem:[#allocation5 + $0x1b0] sm:$0xff]
        %v548 = vld [vmem:[#allocation5 + $0x1b8] sm:$0xff]
        %v549 = vld [vmem:[#allocation5 + $0x1c0] sm:$0xff]
        %v550 = vld [vmem:[#allocation5 + $0x1c8] sm:$0xff]
        %v551 = vld [vmem:[#allocation5 + $0x1d0] sm:$0xf]
        %v552 = vld [vmem:[#allocation5 + $0x1d4] sm:$0xff]
        %v553 = vld [vmem:[#allocation5 + $0x1dc] sm:$0xff]
        %v554 = vld [vmem:[#allocation5 + $0x1e4] sm:$0xff]
        %v555 = vld [vmem:[#allocation5 + $0x1ec] sm:$0xff]
        %v556 = vld [vmem:[#allocation5 + $0x1f4] sm:$0xf]
        %v557 = vld [vmem:[#allocation5 + $0x1f8] sm:$0xff]
        %v558 = vld [vmem:[#allocation5 + $0x200] sm:$0xff]
        %v559 = vld [vmem:[#allocation5 + $0x208] sm:$0xff]
        %v560 = vld [vmem:[#allocation5 + $0x210] sm:$0xff]
        %v561 = vld [vmem:[#allocation5 + $0x218] sm:$0xf]
        %v562 = vld [vmem:[#allocation5 + $0x21c] sm:$0xff]
        %v563 = vld [vmem:[#allocation5 + $0x224] sm:$0xff]
        %v564 = vld [vmem:[#allocation5 + $0x22c] sm:$0xff]
        %v565 = vld [vmem:[#allocation5 + $0x234] sm:$0xff]
        %v566 = vld [vmem:[#allocation5 + $0x23c] sm:$0xf]
        %v647 = vunpack.c.l.b16 %v487
        %v648 = vunpack.c.h.b16 %v487
        %v649 = vunpack.c.l.b16 %v488
        %v650 = vunpack.c.h.b16 %v488
        %v651 = vunpack.c.l.b16 %v489
        %v652 = vunpack.c.h.b16 %v489
        %v653 = vunpack.c.l.b16 %v490
        %v654 = vunpack.c.h.b16 %v490
        %v655 = vunpack.c.l.b16 %v491
        %v656 = vunpack.c.l.b16 %v492
        %v657 = vunpack.c.h.b16 %v492
        %v658 = vunpack.c.l.b16 %v493
        %v659 = vunpack.c.h.b16 %v493
        %v660 = vunpack.c.l.b16 %v494
        %v661 = vunpack.c.h.b16 %v494
        %v662 = vunpack.c.l.b16 %v495
        %v663 = vunpack.c.h.b16 %v495
        %v664 = vunpack.c.l.b16 %v496
        %v665 = vunpack.c.l.b16 %v497
        %v666 = vunpack.c.h.b16 %v497
        %v667 = vunpack.c.l.b16 %v498
        %v668 = vunpack.c.h.b16 %v498
        %v669 = vunpack.c.l.b16 %v499
        %v670 = vunpack.c.h.b16 %v499
        %v671 = vunpack.c.l.b16 %v500
        %v672 = vunpack.c.h.b16 %v500
        %v673 = vunpack.c.l.b16 %v501
        %v674 = vunpack.c.l.b16 %v502
        %v675 = vunpack.c.h.b16 %v502
        %v676 = vunpack.c.l.b16 %v503
        %v677 = vunpack.c.h.b16 %v503
        %v678 = vunpack.c.l.b16 %v504
        %v679 = vunpack.c.h.b16 %v504
        %v680 = vunpack.c.l.b16 %v505
        %v681 = vunpack.c.h.b16 %v505
        %v682 = vunpack.c.l.b16 %v506
        %v683 = vunpack.c.l.b16 %v507
        %v684 = vunpack.c.h.b16 %v507
        %v685 = vunpack.c.l.b16 %v508
        %v686 = vunpack.c.h.b16 %v508
        %v687 = vunpack.c.l.b16 %v509
        %v688 = vunpack.c.h.b16 %v509
        %v689 = vunpack.c.l.b16 %v510
        %v690 = vunpack.c.h.b16 %v510
        %v691 = vunpack.c.l.b16 %v511
        %v692 = vunpack.c.l.b16 %v512
        %v693 = vunpack.c.h.b16 %v512
        %v694 = vunpack.c.l.b16 %v513
        %v695 = vunpack.c.h.b16 %v513
        %v696 = vunpack.c.l.b16 %v514
        %v697 = vunpack.c.h.b16 %v514
        %v698 = vunpack.c.l.b16 %v515
        %v699 = vunpack.c.h.b16 %v515
        %v700 = vunpack.c.l.b16 %v516
        %v701 = vunpack.c.l.b16 %v517
        %v702 = vunpack.c.h.b16 %v517
        %v703 = vunpack.c.l.b16 %v518
        %v704 = vunpack.c.h.b16 %v518
        %v705 = vunpack.c.l.b16 %v519
        %v706 = vunpack.c.h.b16 %v519
        %v707 = vunpack.c.l.b16 %v520
        %v708 = vunpack.c.h.b16 %v520
        %v709 = vunpack.c.l.b16 %v521
        %v710 = vunpack.c.l.b16 %v522
        %v711 = vunpack.c.h.b16 %v522
        %v712 = vunpack.c.l.b16 %v523
        %v713 = vunpack.c.h.b16 %v523
        %v714 = vunpack.c.l.b16 %v524
        %v715 = vunpack.c.h.b16 %v524
        %v716 = vunpack.c.l.b16 %v525
        %v717 = vunpack.c.h.b16 %v525
        %v718 = vunpack.c.l.b16 %v526
        %v719 = vunpack.c.l.b16 %v527
        %v720 = vunpack.c.h.b16 %v527
        %v721 = vunpack.c.l.b16 %v528
        %v722 = vunpack.c.h.b16 %v528
        %v723 = vunpack.c.l.b16 %v529
        %v724 = vunpack.c.h.b16 %v529
        %v725 = vunpack.c.l.b16 %v530
        %v726 = vunpack.c.h.b16 %v530
        %v727 = vunpack.c.l.b16 %v531
        %v728 = vunpack.c.l.b16 %v532
        %v729 = vunpack.c.h.b16 %v532
        %v730 = vunpack.c.l.b16 %v533
        %v731 = vunpack.c.h.b16 %v533
        %v732 = vunpack.c.l.b16 %v534
        %v733 = vunpack.c.h.b16 %v534
        %v734 = vunpack.c.l.b16 %v535
        %v735 = vunpack.c.h.b16 %v535
        %v736 = vunpack.c.l.b16 %v536
        %v737 = vunpack.c.l.b16 %v537
        %v738 = vunpack.c.h.b16 %v537
        %v739 = vunpack.c.l.b16 %v538
        %v740 = vunpack.c.h.b16 %v538
        %v741 = vunpack.c.l.b16 %v539
        %v742 = vunpack.c.h.b16 %v539
        %v743 = vunpack.c.l.b16 %v540
        %v744 = vunpack.c.h.b16 %v540
        %v745 = vunpack.c.l.b16 %v541
        %v746 = vunpack.c.l.b16 %v542
        %v747 = vunpack.c.h.b16 %v542
        %v748 = vunpack.c.l.b16 %v543
        %v749 = vunpack.c.h.b16 %v543
        %v750 = vunpack.c.l.b16 %v544
        %v751 = vunpack.c.h.b16 %v544
        %v752 = vunpack.c.l.b16 %v545
        %v753 = vunpack.c.h.b16 %v545
        %v754 = vunpack.c.l.b16 %v546
        %v755 = vunpack.c.l.b16 %v547
        %v756 = vunpack.c.h.b16 %v547
        %v757 = vunpack.c.l.b16 %v548
        %v758 = vunpack.c.h.b16 %v548
        %v759 = vunpack.c.l.b16 %v549
        %v760 = vunpack.c.h.b16 %v549
        %v761 = vunpack.c.l.b16 %v550
        %v762 = vunpack.c.h.b16 %v550
        %v763 = vunpack.c.l.b16 %v551
        %v764 = vunpack.c.l.b16 %v552
        %v765 = vunpack.c.h.b16 %v552
        %v766 = vunpack.c.l.b16 %v553
        %v767 = vunpack.c.h.b16 %v553
        %v768 = vunpack.c.l.b16 %v554
        %v769 = vunpack.c.h.b16 %v554
        %v770 = vunpack.c.l.b16 %v555
        %v771 = vunpack.c.h.b16 %v555
        %v772 = vunpack.c.l.b16 %v556
        %v773 = vunpack.c.l.b16 %v557
        %v774 = vunpack.c.h.b16 %v557
        %v775 = vunpack.c.l.b16 %v558
        %v776 = vunpack.c.h.b16 %v558
        %v777 = vunpack.c.l.b16 %v559
        %v778 = vunpack.c.h.b16 %v559
        %v779 = vunpack.c.l.b16 %v560
        %v780 = vunpack.c.h.b16 %v560
        %v781 = vunpack.c.l.b16 %v561
        %v782 = vunpack.c.l.b16 %v562
        %v783 = vunpack.c.h.b16 %v562
        %v784 = vunpack.c.l.b16 %v563
        %v785 = vunpack.c.h.b16 %v563
        %v786 = vunpack.c.l.b16 %v564
        %v787 = vunpack.c.h.b16 %v564
        %v788 = vunpack.c.l.b16 %v565
        %v789 = vunpack.c.h.b16 %v565
        %v790 = vunpack.c.l.b16 %v566
        %v791 = vpack.c.b16 %v656, %v647
        %v792 = vpack.c.b16 %v657, %v648
        %v793 = vpack.c.b16 %v658, %v649
        %v794 = vpack.c.b16 %v659, %v650
        %v795 = vpack.c.b16 %v660, %v651
        %v796 = vpack.c.b16 %v661, %v652
        %v797 = vpack.c.b16 %v662, %v653
        %v798 = vpack.c.b16 %v663, %v654
        %v799 = vpack.c.b16 %v664, %v655
        %v800 = vpack.c.b16 %v674, %v665
        %v801 = vpack.c.b16 %v675, %v666
        %v802 = vpack.c.b16 %v676, %v667
        %v803 = vpack.c.b16 %v677, %v668
        %v804 = vpack.c.b16 %v678, %v669
        %v805 = vpack.c.b16 %v679, %v670
        %v806 = vpack.c.b16 %v680, %v671
        %v807 = vpack.c.b16 %v681, %v672
        %v808 = vpack.c.b16 %v682, %v673
        %v809 = vpack.c.b16 %v692, %v683
        %v810 = vpack.c.b16 %v693, %v684
        %v811 = vpack.c.b16 %v694, %v685
        %v812 = vpack.c.b16 %v695, %v686
        %v813 = vpack.c.b16 %v696, %v687
        %v814 = vpack.c.b16 %v697, %v688
        %v815 = vpack.c.b16 %v698, %v689
        %v816 = vpack.c.b16 %v699, %v690
        %v817 = vpack.c.b16 %v700, %v691
        %v818 = vpack.c.b16 %v710, %v701
        %v819 = vpack.c.b16 %v711, %v702
        %v820 = vpack.c.b16 %v712, %v703
        %v821 = vpack.c.b16 %v713, %v704
        %v822 = vpack.c.b16 %v714, %v705
        %v823 = vpack.c.b16 %v715, %v706
        %v824 = vpack.c.b16 %v716, %v707
        %v825 = vpack.c.b16 %v717, %v708
        %v826 = vpack.c.b16 %v718, %v709
        %v827 = vpack.c.b16 %v728, %v719
        %v828 = vpack.c.b16 %v729, %v720
        %v829 = vpack.c.b16 %v730, %v721
        %v830 = vpack.c.b16 %v731, %v722
        %v831 = vpack.c.b16 %v732, %v723
        %v832 = vpack.c.b16 %v733, %v724
        %v833 = vpack.c.b16 %v734, %v725
        %v834 = vpack.c.b16 %v735, %v726
        %v835 = vpack.c.b16 %v736, %v727
        %v836 = vpack.c.b16 %v746, %v737
        %v837 = vpack.c.b16 %v747, %v738
        %v838 = vpack.c.b16 %v748, %v739
        %v839 = vpack.c.b16 %v749, %v740
        %v840 = vpack.c.b16 %v750, %v741
        %v841 = vpack.c.b16 %v751, %v742
        %v842 = vpack.c.b16 %v752, %v743
        %v843 = vpack.c.b16 %v753, %v744
        %v844 = vpack.c.b16 %v754, %v745
        %v845 = vpack.c.b16 %v764, %v755
        %v846 = vpack.c.b16 %v765, %v756
        %v847 = vpack.c.b16 %v766, %v757
        %v848 = vpack.c.b16 %v767, %v758
        %v849 = vpack.c.b16 %v768, %v759
        %v850 = vpack.c.b16 %v769, %v760
        %v851 = vpack.c.b16 %v770, %v761
        %v852 = vpack.c.b16 %v771, %v762
        %v853 = vpack.c.b16 %v772, %v763
        %v854 = vpack.c.b16 %v782, %v773
        %v855 = vpack.c.b16 %v783, %v774
        %v856 = vpack.c.b16 %v784, %v775
        %v857 = vpack.c.b16 %v785, %v776
        %v858 = vpack.c.b16 %v786, %v777
        %v859 = vpack.c.b16 %v787, %v778
        %v860 = vpack.c.b16 %v788, %v779
        %v861 = vpack.c.b16 %v789, %v780
        %v862 = vpack.c.b16 %v790, %v781
        %935 = vmatprep.subr.bf16.mxu0 %v855
        %936 = vmatpush1.bf16.msra.mxu0 %v854
        %937 = vmatprep.subr.bf16.mxu0 %v846
        %938 = vmatpush1.bf16.msra.mxu0 %v845
        %939 = vmatprep.subr.bf16.mxu0 %v837
        %940 = vmatpush1.bf16.msra.mxu0 %v836
        %941 = vmatprep.subr.bf16.mxu0 %v828
        %942 = vmatpush1.bf16.msra.mxu0 %v827
        %943 = vmatprep.subr.bf16.mxu0 %v819
        %944 = vmatpush1.bf16.msra.mxu0 %v818
        %945 = vmatprep.subr.bf16.mxu0 %v810
        %946 = vmatpush1.bf16.msra.mxu0 %v809
        %947 = vmatprep.subr.bf16.mxu0 %v801
        %948 = vmatpush1.bf16.msra.mxu0 %v800
        %949 = vmatprep.subr.bf16.mxu0 %v792
        %950 = vmatpush1.bf16.msra.mxu0 %v791
        %951 = vmatprep.subr.bf16.mxu0 0
        %952 = vmatpush2.bf16.msra.mxu0 0
        %953 = vmatprep.subr.bf16.mxu0 0
        %954 = vmatpush2.bf16.msra.mxu0 0
        %955 = vmatprep.subr.bf16.mxu0 0
        %956 = vmatpush2.bf16.msra.mxu0 0
        %957 = vmatprep.subr.bf16.mxu0 0
        %958 = vmatpush2.bf16.msra.mxu0 0
        %959 = vmatprep.subr.bf16.mxu0 0
        %960 = vmatpush2.bf16.msra.mxu0 0
        %961 = vmatprep.subr.bf16.mxu0 0
        %962 = vmatpush2.bf16.msra.mxu0 0
        %963 = vmatprep.subr.bf16.mxu0 0
        %964 = vmatpush2.bf16.msra.mxu0 0
        %965 = vmatprep.subr.bf16.mxu0 0
        %966 = vmatpush2.bf16.msra.mxu0 0
        %967 = vmatprep.mubr.bf16.mxu0 0
        %968 = vmatmul.mubr.bf16.gmra.mxu0 %v486
        %v969 = vpop.f32.mrf.mxu0
        %v970 = vadd.f32 0.0, %v969
        %v971 = vpop.f32.mrf.mxu0
        %v972 = vadd.f32 0.0, %v971
        %v973 = vpop.f32.mrf.mxu0
        %v974 = vpop.f32.mrf.mxu0
        %975 = vdwg.mxu0
        %976 = vmatprep.subr.bf16.mxu0 %v857
        %977 = vmatpush1.bf16.msra.mxu0 %v856
        %978 = vmatprep.subr.bf16.mxu0 %v848
        %979 = vmatpush1.bf16.msra.mxu0 %v847
        %980 = vmatprep.subr.bf16.mxu0 %v839
        %981 = vmatpush1.bf16.msra.mxu0 %v838
        %982 = vmatprep.subr.bf16.mxu0 %v830
        %983 = vmatpush1.bf16.msra.mxu0 %v829
        %984 = vmatprep.subr.bf16.mxu0 %v821
        %985 = vmatpush1.bf16.msra.mxu0 %v820
        %986 = vmatprep.subr.bf16.mxu0 %v812
        %987 = vmatpush1.bf16.msra.mxu0 %v811
        %988 = vmatprep.subr.bf16.mxu0 %v803
        %989 = vmatpush1.bf16.msra.mxu0 %v802
        %990 = vmatprep.subr.bf16.mxu0 %v794
        %991 = vmatpush1.bf16.msra.mxu0 %v793
        %992 = vmatprep.subr.bf16.mxu0 0
        %993 = vmatpush2.bf16.msra.mxu0 0
        %994 = vmatprep.subr.bf16.mxu0 0
        %995 = vmatpush2.bf16.msra.mxu0 0
        %996 = vmatprep.subr.bf16.mxu0 0
        %997 = vmatpush2.bf16.msra.mxu0 0
        %998 = vmatprep.subr.bf16.mxu0 0
        %999 = vmatpush2.bf16.msra.mxu0 0
        %1000 = vmatprep.subr.bf16.mxu0 0
        %1001 = vmatpush2.bf16.msra.mxu0 0
        %1002 = vmatprep.subr.bf16.mxu0 0
        %1003 = vmatpush2.bf16.msra.mxu0 0
        %1004 = vmatprep.subr.bf16.mxu0 0
        %1005 = vmatpush2.bf16.msra.mxu0 0
        %1006 = vmatprep.subr.bf16.mxu0 0
        %1007 = vmatpush2.bf16.msra.mxu0 0
        %1008 = vmatprep.mubr.bf16.mxu0 0
        %1009 = vmatmul.mubr.bf16.gmra.mxu0 %v486
        %v1010 = vpop.f32.mrf.mxu0
        %v1011 = vadd.f32 0.0, %v1010
        %v1012 = vpop.f32.mrf.mxu0
        %v1013 = vadd.f32 0.0, %v1012
        %v1014 = vpop.f32.mrf.mxu0
        %v1015 = vpop.f32.mrf.mxu0
        %1016 = vdwg.mxu0
        %1017 = vmatprep.subr.bf16.mxu0 %v859
        %1018 = vmatpush1.bf16.msra.mxu0 %v858
        %1019 = vmatprep.subr.bf16.mxu0 %v850
        %1020 = vmatpush1.bf16.msra.mxu0 %v849
        %1021 = vmatprep.subr.bf16.mxu0 %v841
        %1022 = vmatpush1.bf16.msra.mxu0 %v840
        %1023 = vmatprep.subr.bf16.mxu0 %v832
        %1024 = vmatpush1.bf16.msra.mxu0 %v831
        %1025 = vmatprep.subr.bf16.mxu0 %v823
        %1026 = vmatpush1.bf16.msra.mxu0 %v822
        %1027 = vmatprep.subr.bf16.mxu0 %v814
        %1028 = vmatpush1.bf16.msra.mxu0 %v813
        %1029 = vmatprep.subr.bf16.mxu0 %v805
        %1030 = vmatpush1.bf16.msra.mxu0 %v804
        %1031 = vmatprep.subr.bf16.mxu0 %v796
        %1032 = vmatpush1.bf16.msra.mxu0 %v795
        %1033 = vmatprep.subr.bf16.mxu0 0
        %1034 = vmatpush2.bf16.msra.mxu0 0
        %1035 = vmatprep.subr.bf16.mxu0 0
        %1036 = vmatpush2.bf16.msra.mxu0 0
        %1037 = vmatprep.subr.bf16.mxu0 0
        %1038 = vmatpush2.bf16.msra.mxu0 0
        %1039 = vmatprep.subr.bf16.mxu0 0
        %1040 = vmatpush2.bf16.msra.mxu0 0
        %1041 = vmatprep.subr.bf16.mxu0 0
        %1042 = vmatpush2.bf16.msra.mxu0 0
        %1043 = vmatprep.subr.bf16.mxu0 0
        %1044 = vmatpush2.bf16.msra.mxu0 0
        %1045 = vmatprep.subr.bf16.mxu0 0
        %1046 = vmatpush2.bf16.msra.mxu0 0
        %1047 = vmatprep.subr.bf16.mxu0 0
        %1048 = vmatpush2.bf16.msra.mxu0 0
        %1049 = vmatprep.mubr.bf16.mxu0 0
        %1050 = vmatmul.mubr.bf16.gmra.mxu0 %v486
        %v1051 = vpop.f32.mrf.mxu0
        %v1052 = vadd.f32 0.0, %v1051
        %v1053 = vpop.f32.mrf.mxu0
        %v1054 = vadd.f32 0.0, %v1053
        %v1055 = vpop.f32.mrf.mxu0
        %v1056 = vpop.f32.mrf.mxu0
        %1057 = vdwg.mxu0
        %1058 = vmatprep.subr.bf16.mxu0 %v861
        %1059 = vmatpush1.bf16.msra.mxu0 %v860
        %1060 = vmatprep.subr.bf16.mxu0 %v852
        %1061 = vmatpush1.bf16.msra.mxu0 %v851
        %1062 = vmatprep.subr.bf16.mxu0 %v843
        %1063 = vmatpush1.bf16.msra.mxu0 %v842
        %1064 = vmatprep.subr.bf16.mxu0 %v834
        %1065 = vmatpush1.bf16.msra.mxu0 %v833
        %1066 = vmatprep.subr.bf16.mxu0 %v825
        %1067 = vmatpush1.bf16.msra.mxu0 %v824
        %1068 = vmatprep.subr.bf16.mxu0 %v816
        %1069 = vmatpush1.bf16.msra.mxu0 %v815
        %1070 = vmatprep.subr.bf16.mxu0 %v807
        %1071 = vmatpush1.bf16.msra.mxu0 %v806
        %1072 = vmatprep.subr.bf16.mxu0 %v798
        %1073 = vmatpush1.bf16.msra.mxu0 %v797
        %1074 = vmatprep.subr.bf16.mxu0 0
        %1075 = vmatpush2.bf16.msra.mxu0 0
        %1076 = vmatprep.subr.bf16.mxu0 0
        %1077 = vmatpush2.bf16.msra.mxu0 0
        %1078 = vmatprep.subr.bf16.mxu0 0
        %1079 = vmatpush2.bf16.msra.mxu0 0
        %1080 = vmatprep.subr.bf16.mxu0 0
        %1081 = vmatpush2.bf16.msra.mxu0 0
        %1082 = vmatprep.subr.bf16.mxu0 0
        %1083 = vmatpush2.bf16.msra.mxu0 0
        %1084 = vmatprep.subr.bf16.mxu0 0
        %1085 = vmatpush2.bf16.msra.mxu0 0
        %1086 = vmatprep.subr.bf16.mxu0 0
        %1087 = vmatpush2.bf16.msra.mxu0 0
        %1088 = vmatprep.subr.bf16.mxu0 0
        %1089 = vmatpush2.bf16.msra.mxu0 0
        %1090 = vmatprep.mubr.bf16.mxu0 0
        %1091 = vmatmul.mubr.bf16.gmra.mxu0 %v486
        %v1092 = vpop.f32.mrf.mxu0
        %v1093 = vadd.f32 0.0, %v1092
        %v1094 = vpop.f32.mrf.mxu0
        %v1095 = vadd.f32 0.0, %v1094
        %v1096 = vpop.f32.mrf.mxu0
        %v1097 = vpop.f32.mrf.mxu0
        %1098 = vdwg.mxu0
        %1099 = vmatprep.subr.bf16.mxu0 0
        %1100 = vmatpush1.bf16.msra.mxu0 %v862
        %1101 = vmatprep.subr.bf16.mxu0 0
        %1102 = vmatpush1.bf16.msra.mxu0 %v853
        %1103 = vmatprep.subr.bf16.mxu0 0
        %1104 = vmatpush1.bf16.msra.mxu0 %v844
        %1105 = vmatprep.subr.bf16.mxu0 0
        %1106 = vmatpush1.bf16.msra.mxu0 %v835
        %1107 = vmatprep.subr.bf16.mxu0 0
        %1108 = vmatpush1.bf16.msra.mxu0 %v826
        %1109 = vmatprep.subr.bf16.mxu0 0
        %1110 = vmatpush1.bf16.msra.mxu0 %v817
        %1111 = vmatprep.subr.bf16.mxu0 0
        %1112 = vmatpush1.bf16.msra.mxu0 %v808
        %1113 = vmatprep.subr.bf16.mxu0 0
        %1114 = vmatpush1.bf16.msra.mxu0 %v799
        %1115 = vmatprep.subr.bf16.mxu0 0
        %1116 = vmatpush2.bf16.msra.mxu0 0
        %1117 = vmatprep.subr.bf16.mxu0 0
        %1118 = vmatpush2.bf16.msra.mxu0 0
        %1119 = vmatprep.subr.bf16.mxu0 0
        %1120 = vmatpush2.bf16.msra.mxu0 0
        %1121 = vmatprep.subr.bf16.mxu0 0
        %1122 = vmatpush2.bf16.msra.mxu0 0
        %1123 = vmatprep.subr.bf16.mxu0 0
        %1124 = vmatpush2.bf16.msra.mxu0 0
        %1125 = vmatprep.subr.bf16.mxu0 0
        %1126 = vmatpush2.bf16.msra.mxu0 0
        %1127 = vmatprep.subr.bf16.mxu0 0
        %1128 = vmatpush2.bf16.msra.mxu0 0
        %1129 = vmatprep.subr.bf16.mxu0 0
        %1130 = vmatpush2.bf16.msra.mxu0 0
        %1131 = vmatprep.mubr.bf16.mxu0 0
        %1132 = vmatmul.mubr.bf16.gmra.mxu0 %v486
        %v1133 = vpop.f32.mrf.mxu0
        %v1134 = vadd.f32 0.0, %v1133
        %v1135 = vpop.f32.mrf.mxu0
        %v1136 = vpop.f32.mrf.mxu0
        %v1137 = vpop.f32.mrf.mxu0
        %1138 = vdwg.mxu0
        %v1139 = vmax.f32 %v970, %v972
        %v1140 = vmax.f32 %v1139, %v1011
        %v1141 = vmax.f32 %v1140, %v1013
        %v1142 = vmax.f32 %v1141, %v1052
        %v1143 = vmax.f32 %v1142, %v1054
        %v1144 = vmax.f32 %v1143, %v1093
        %v1145 = vmax.f32 %v1144, %v1095
        %v1146 = vmax.f32 %v1145, %v1134
        %v1147 = vpack.c.bf16 %v1146, %v1146
        %v1148 = vld [vmem:[%s3] sm:$0xf]
        %v1149 = vld [vmem:[%s3 + $0x4] sm:$0xf]
        %v1150 = vld [vmem:[%s3 + $0x8] sm:$0xf]
        %v1154 = vunpack.c.l.b16 %v1148
        %v1155 = vunpack.c.l.b16 %v1149
        %v1156 = vunpack.c.l.b16 %v1150
        %v1157 = vpack.c.b16 %v1155, %v1154
        %v1158 = vpack.c.b16 %v1156, %v1156
        %vm1159 = vcmask 64512
        %v1161 = vsel %vm1159, %v1157, 0
        %v1164 = vsel %vm1159, %v1158, 0
        %vm1166 = vcmask 1043456
        %v1168 = vsel %vm1166, %v1147, 0
        %1170 = vmatprep.subr.bf16.mxu0 0
        %1171 = vmatpush1.bf16.msra.mxu0 0
        %1172 = vmatprep.subr.bf16.mxu0 0
        %1173 = vmatpush1.bf16.msra.mxu0 0
        %1174 = vmatprep.subr.bf16.mxu0 0
        %1175 = vmatpush1.bf16.msra.mxu0 0
        %1176 = vmatprep.subr.bf16.mxu0 0
        %1177 = vmatpush1.bf16.msra.mxu0 0
        %1178 = vmatprep.subr.bf16.mxu0 0
        %1179 = vmatpush1.bf16.msra.mxu0 0
        %1180 = vmatprep.subr.bf16.mxu0 0
        %1181 = vmatpush1.bf16.msra.mxu0 0
        %1182 = vmatprep.subr.bf16.mxu0 0
        %1183 = vmatpush1.bf16.msra.mxu0 0
        %1184 = vmatprep.subr.bf16.mxu0 0
        %1185 = vmatpush1.bf16.msra.mxu0 %v1168
        %1186 = vmatprep.subr.bf16.mxu0 0
        %1187 = vmatpush2.bf16.msra.mxu0 0
        %1188 = vmatprep.subr.bf16.mxu0 0
        %1189 = vmatpush2.bf16.msra.mxu0 0
        %1190 = vmatprep.subr.bf16.mxu0 0
        %1191 = vmatpush2.bf16.msra.mxu0 0
        %1192 = vmatprep.subr.bf16.mxu0 0
        %1193 = vmatpush2.bf16.msra.mxu0 0
        %1194 = vmatprep.subr.bf16.mxu0 0
        %1195 = vmatpush2.bf16.msra.mxu0 0
        %1196 = vmatprep.subr.bf16.mxu0 0
        %1197 = vmatpush2.bf16.msra.mxu0 0
        %1198 = vmatprep.subr.bf16.mxu0 0
        %1199 = vmatpush2.bf16.msra.mxu0 0
        %1200 = vmatprep.subr.bf16.mxu0 0
        %1201 = vmatpush2.bf16.msra.mxu0 0
        %1202 = vmatprep.mubr.bf16.mxu0 0
        %1203 = vmatmul.mubr.bf16.gmra.mxu0 %v1161
        %v1204 = vpop.f32.mrf.mxu0
        %v1205 = vadd.f32 0.0, %v1204
        %v1206 = vpop.f32.mrf.mxu0
        %v1207 = vpop.f32.mrf.mxu0
        %v1208 = vadd.f32 0.0, %v1207
        %v1209 = vpop.f32.mrf.mxu0
        %1210 = vmatprep.mubr.bf16.mxu0 0
        %1211 = vmatmul.mubr.bf16.gmra.mxu0 %v1164
        %v1212 = vpop.f32.mrf.mxu0
        %v1213 = vadd.f32 0.0, %v1212
        %v1214 = vpop.f32.mrf.mxu0
        %v1215 = vpop.f32.mrf.mxu0
        %v1216 = vpop.f32.mrf.mxu0
        %1217 = vdwg.mxu0
        %v1218 = vpack.c.bf16 %v1205, %v1205
        %v1219 = vld [vmem:[#allocation7] sm:$0xf]
        %v1220 = vld [vmem:[#allocation7 + $0x4] sm:$0xf]
        %v1221 = vld [vmem:[#allocation7 + $0x8] sm:$0xf]
        %v1222 = vld [vmem:[#allocation7 + $0xc] sm:$0xf]
        %v1223 = vld [vmem:[#allocation7 + $0x10] sm:$0xf]
        %v1224 = vld [vmem:[#allocation7 + $0x14] sm:$0xf]
        %v1225 = vld [vmem:[#allocation7 + $0x18] sm:$0xf]
        %v1226 = vld [vmem:[#allocation7 + $0x1c] sm:$0xf]
        %v1227 = vld [vmem:[#allocation7 + $0x20] sm:$0xf]
        %v1228 = vld [vmem:[#allocation7 + $0x24] sm:$0xf]
        %v1229 = vld [vmem:[#allocation7 + $0x28] sm:$0xf]
        %v1230 = vld [vmem:[#allocation7 + $0x2c] sm:$0xf]
        %v1231 = vld [vmem:[#allocation7 + $0x30] sm:$0xf]
        %v1232 = vld [vmem:[#allocation7 + $0x34] sm:$0xf]
        %v1233 = vld [vmem:[#allocation7 + $0x38] sm:$0xf]
        %v1234 = vld [vmem:[#allocation7 + $0x3c] sm:$0xf]
        %v1251 = vunpack.c.l.b16 %v1219
        %v1252 = vunpack.c.l.b16 %v1220
        %v1253 = vunpack.c.l.b16 %v1221
        %v1254 = vunpack.c.l.b16 %v1222
        %v1255 = vunpack.c.l.b16 %v1223
        %v1256 = vunpack.c.l.b16 %v1224
        %v1257 = vunpack.c.l.b16 %v1225
        %v1258 = vunpack.c.l.b16 %v1226
        %v1259 = vunpack.c.l.b16 %v1227
        %v1260 = vunpack.c.l.b16 %v1228
        %v1261 = vunpack.c.l.b16 %v1229
        %v1262 = vunpack.c.l.b16 %v1230
        %v1263 = vunpack.c.l.b16 %v1231
        %v1264 = vunpack.c.l.b16 %v1232
        %v1265 = vunpack.c.l.b16 %v1233
        %v1266 = vunpack.c.l.b16 %v1234
        %v1267 = vpack.c.b16 %v1252, %v1251
        %v1268 = vpack.c.b16 %v1254, %v1253
        %v1269 = vpack.c.b16 %v1256, %v1255
        %v1270 = vpack.c.b16 %v1258, %v1257
        %v1271 = vpack.c.b16 %v1260, %v1259
        %v1272 = vpack.c.b16 %v1262, %v1261
        %v1273 = vpack.c.b16 %v1264, %v1263
        %v1274 = vpack.c.b16 %v1266, %v1265
        %1283 = vmatprep.subr.bf16.mxu0 0
        %1284 = vmatpush1.bf16.msra.mxu0 %v1274
        %1285 = vmatprep.subr.bf16.mxu0 0
        %1286 = vmatpush1.bf16.msra.mxu0 %v1273
        %1287 = vmatprep.subr.bf16.mxu0 0
        %1288 = vmatpush1.bf16.msra.mxu0 %v1272
        %1289 = vmatprep.subr.bf16.mxu0 0
        %1290 = vmatpush1.bf16.msra.mxu0 %v1271
        %1291 = vmatprep.subr.bf16.mxu0 0
        %1292 = vmatpush1.bf16.msra.mxu0 %v1270
        %1293 = vmatprep.subr.bf16.mxu0 0
        %1294 = vmatpush1.bf16.msra.mxu0 %v1269
        %1295 = vmatprep.subr.bf16.mxu0 0
        %1296 = vmatpush1.bf16.msra.mxu0 %v1268
        %1297 = vmatprep.subr.bf16.mxu0 0
        %1298 = vmatpush1.bf16.msra.mxu0 %v1267
        %1299 = vmatprep.subr.bf16.mxu0 0
        %1300 = vmatpush2.bf16.msra.mxu0 0
        %1301 = vmatprep.subr.bf16.mxu0 0
        %1302 = vmatpush2.bf16.msra.mxu0 0
        %1303 = vmatprep.subr.bf16.mxu0 0
        %1304 = vmatpush2.bf16.msra.mxu0 0
        %1305 = vmatprep.subr.bf16.mxu0 0
        %1306 = vmatpush2.bf16.msra.mxu0 0
        %1307 = vmatprep.subr.bf16.mxu0 0
        %1308 = vmatpush2.bf16.msra.mxu0 0
        %1309 = vmatprep.subr.bf16.mxu0 0
        %1310 = vmatpush2.bf16.msra.mxu0 0
        %1311 = vmatprep.subr.bf16.mxu0 0
        %1312 = vmatpush2.bf16.msra.mxu0 0
        %1313 = vmatprep.subr.bf16.mxu0 0
        %1314 = vmatpush2.bf16.msra.mxu0 0
        %1315 = vmatprep.mubr.bf16.mxu0 0
        %1316 = vmatmul.mubr.bf16.gmra.mxu0 %v1218
        %v1317 = vpop.f32.mrf.mxu0
        %v1318 = vadd.f32 0.0, %v1317
        %v1319 = vpop.f32.mrf.mxu0
        %v1320 = vpop.f32.mrf.mxu0
        %v1321 = vpop.f32.mrf.mxu0
        %1322 = vdwg.mxu0
        %v1323 = vmul.f32 %v1318, %v1208
        %v1324 = vlaneseq
        %v1325 = vshrl.u32 %v1324, 7
        %vm1326 = vcmp.lt.s32.totalorder %v1325, 4
        %v1327 = vsel %vm1326, 0.0, -1e+30
        %v1328 = vadd.f32 %v1323, %v1327
        %v1329 = vrot.slane %v1328, 4
        %v1330 = vmax.f32 %v1328, %v1329
        %v1331 = vrot.slane %v1330, 2
        %v1332 = vmax.f32 %v1330, %v1331
        %v1333 = vrot.slane %v1332, 1
        %v1334 = vmax.f32 %v1332, %v1333
        %v1335 = vsub.f32 %v1328, %v1334
        %v1336 = vmul.f32 %v1335, 1.442695
        %v1337 = vpow.pop %v1336
        %v1338 = vrot.slane %v1337, 4
        %v1339 = vadd.f32 %v1337, %v1338
        %v1340 = vrot.slane %v1339, 2
        %v1341 = vadd.f32 %v1339, %v1340
        %v1342 = vrot.slane %v1341, 1
        %v1343 = vadd.f32 %v1341, %v1342
        %v1344 = vrcp.pop %v1343
        %v1345 = vmul.f32 %v1337, %v1344
        %v1346 = vmul.f32 %v1213, %v1345
        %v1347 = vpack.c.bf16 %v1346, %v1346
        %v1348 = vld [vmem:[#allocation8] sm:$0xff]
        %v1349 = vld [vmem:[#allocation8 + $0x8] sm:$0xff]
        %v1350 = vld [vmem:[#allocation8 + $0x10] sm:$0xff]
        %v1351 = vld [vmem:[#allocation8 + $0x18] sm:$0xff]
        %v1352 = vld [vmem:[#allocation8 + $0x20] sm:$0xff]
        %v1353 = vld [vmem:[#allocation8 + $0x28] sm:$0xff]
        %v1354 = vld [vmem:[#allocation8 + $0x30] sm:$0xff]
        %v1355 = vld [vmem:[#allocation8 + $0x38] sm:$0xff]
        %v1356 = vld [vmem:[#allocation8 + $0x40] sm:$0xff]
        %v1357 = vld [vmem:[#allocation8 + $0x48] sm:$0xff]
        %v1358 = vld [vmem:[#allocation8 + $0x50] sm:$0xff]
        %v1359 = vld [vmem:[#allocation8 + $0x58] sm:$0xff]
        %v1360 = vld [vmem:[#allocation8 + $0x60] sm:$0xff]
        %v1361 = vld [vmem:[#allocation8 + $0x68] sm:$0xff]
        %v1362 = vld [vmem:[#allocation8 + $0x70] sm:$0xff]
        %v1363 = vld [vmem:[#allocation8 + $0x78] sm:$0xff]
        %v1380 = vunpack.c.l.b16 %v1348
        %v1381 = vunpack.c.h.b16 %v1348
        %v1382 = vunpack.c.l.b16 %v1349
        %v1383 = vunpack.c.h.b16 %v1349
        %v1384 = vunpack.c.l.b16 %v1350
        %v1385 = vunpack.c.h.b16 %v1350
        %v1386 = vunpack.c.l.b16 %v1351
        %v1387 = vunpack.c.h.b16 %v1351
        %v1388 = vunpack.c.l.b16 %v1352
        %v1389 = vunpack.c.h.b16 %v1352
        %v1390 = vunpack.c.l.b16 %v1353
        %v1391 = vunpack.c.h.b16 %v1353
        %v1392 = vunpack.c.l.b16 %v1354
        %v1393 = vunpack.c.h.b16 %v1354
        %v1394 = vunpack.c.l.b16 %v1355
        %v1395 = vunpack.c.h.b16 %v1355
        %v1396 = vunpack.c.l.b16 %v1356
        %v1397 = vunpack.c.h.b16 %v1356
        %v1398 = vunpack.c.l.b16 %v1357
        %v1399 = vunpack.c.h.b16 %v1357
        %v1400 = vunpack.c.l.b16 %v1358
        %v1401 = vunpack.c.h.b16 %v1358
        %v1402 = vunpack.c.l.b16 %v1359
        %v1403 = vunpack.c.h.b16 %v1359
        %v1404 = vunpack.c.l.b16 %v1360
        %v1405 = vunpack.c.h.b16 %v1360
        %v1406 = vunpack.c.l.b16 %v1361
        %v1407 = vunpack.c.h.b16 %v1361
        %v1408 = vunpack.c.l.b16 %v1362
        %v1409 = vunpack.c.h.b16 %v1362
        %v1410 = vunpack.c.l.b16 %v1363
        %v1411 = vunpack.c.h.b16 %v1363
        %v1412 = vpack.c.b16 %v1382, %v1380
        %v1413 = vpack.c.b16 %v1383, %v1381
        %v1414 = vpack.c.b16 %v1386, %v1384
        %v1415 = vpack.c.b16 %v1387, %v1385
        %v1416 = vpack.c.b16 %v1390, %v1388
        %v1417 = vpack.c.b16 %v1391, %v1389
        %v1418 = vpack.c.b16 %v1394, %v1392
        %v1419 = vpack.c.b16 %v1395, %v1393
        %v1420 = vpack.c.b16 %v1398, %v1396
        %v1421 = vpack.c.b16 %v1399, %v1397
        %v1422 = vpack.c.b16 %v1402, %v1400
        %v1423 = vpack.c.b16 %v1403, %v1401
        %v1424 = vpack.c.b16 %v1406, %v1404
        %v1425 = vpack.c.b16 %v1407, %v1405
        %v1426 = vpack.c.b16 %v1410, %v1408
        %v1427 = vpack.c.b16 %v1411, %v1409
        %1444 = vmatprep.subr.bf16.mxu0 %v1427
        %1445 = vmatpush1.bf16.msra.mxu0 %v1426
        %1446 = vmatprep.subr.bf16.mxu0 %v1425
        %1447 = vmatpush1.bf16.msra.mxu0 %v1424
        %1448 = vmatprep.subr.bf16.mxu0 %v1423
        %1449 = vmatpush1.bf16.msra.mxu0 %v1422
        %1450 = vmatprep.subr.bf16.mxu0 %v1421
        %1451 = vmatpush1.bf16.msra.mxu0 %v1420
        %1452 = vmatprep.subr.bf16.mxu0 %v1419
        %1453 = vmatpush1.bf16.msra.mxu0 %v1418
        %1454 = vmatprep.subr.bf16.mxu0 %v1417
        %1455 = vmatpush1.bf16.msra.mxu0 %v1416
        %1456 = vmatprep.subr.bf16.mxu0 %v1415
        %1457 = vmatpush1.bf16.msra.mxu0 %v1414
        %1458 = vmatprep.subr.bf16.mxu0 %v1413
        %1459 = vmatpush1.bf16.msra.mxu0 %v1412
        %1460 = vmatprep.subr.bf16.mxu0 0
        %1461 = vmatpush2.bf16.msra.mxu0 0
        %1462 = vmatprep.subr.bf16.mxu0 0
        %1463 = vmatpush2.bf16.msra.mxu0 0
        %1464 = vmatprep.subr.bf16.mxu0 0
        %1465 = vmatpush2.bf16.msra.mxu0 0
        %1466 = vmatprep.subr.bf16.mxu0 0
        %1467 = vmatpush2.bf16.msra.mxu0 0
        %1468 = vmatprep.subr.bf16.mxu0 0
        %1469 = vmatpush2.bf16.msra.mxu0 0
        %1470 = vmatprep.subr.bf16.mxu0 0
        %1471 = vmatpush2.bf16.msra.mxu0 0
        %1472 = vmatprep.subr.bf16.mxu0 0
        %1473 = vmatpush2.bf16.msra.mxu0 0
        %1474 = vmatprep.subr.bf16.mxu0 0
        %1475 = vmatpush2.bf16.msra.mxu0 0
        %1476 = vmatprep.mubr.bf16.mxu0 0
        %1477 = vmatmul.mubr.bf16.gmra.mxu0 %v1347
        %v1478 = vpop.f32.mrf.mxu0
        %v1479 = vadd.f32 0.0, %v1478
        %v1480 = vpop.f32.mrf.mxu0
        %v1481 = vadd.f32 0.0, %v1480
        %v1482 = vpop.f32.mrf.mxu0
        %v1483 = vpop.f32.mrf.mxu0
        %1484 = vdwg.mxu0
        %1485 = vst [vmem:[%s303] sm:$0xff] %v1479
        %1486 = vst [vmem:[%s303 + $0x8] sm:$0xff] %v1481
        %s1487 = sand.u32 %s162, 1
        %s1488 = scalar_lea.sflag [#allocation4], %s1487
        %s1489 = sand.u32 %s162, 1
        %s1490 = smul.addr %s1489, 16
        %s1491 = scalar_lea.vmem [#allocation10], %s1490
        // Predicated region
        $region61: #{tpu_custom_call.1} parent=43 // pred_check
          %p1492 = pneg %p172
        $region62: #{tpu_custom_call.1} parent=43 // pred_check_branch
          %1494 = sbr.rel (%p1492) target = $region64
        $region63: #{tpu_custom_call.1} parent=43 // pred_region
          %s1496 = ssub.s32 256, 256
          %1497 = vsyncadd %s1488, %s1496
          %s1498 = smul.addr %s23, 2
          %s1499 = smul.addr %s1498, 128
          %s1500 = scalar_lea.hbm %s6, %s1499
          %s1502 = sshll.u32 %s1491, 4
          %s1503 = int_to_ptr.vmem [resolvable:$true] %s1502
          %1505 = dma.vmem_to_hbm [thread:$0]  %s1503, 256, %s1500, %s1488
        $region64: #{tpu_custom_call.1} parent=43 // pred_fallthru
          _
      $region44: #{tpu_custom_call.1} parent=5 // pred_fallthru
        _
      %p1506 = scmp.le.s32.totalorder 2, %s18
      // Predicated region
      $region65: #{tpu_custom_call.1} parent=5 // pred_check
        %p1507 = pneg %p1506
      $region66: #{tpu_custom_call.1} parent=5 // pred_check_branch
        %1509 = sbr.rel (%p1507) target = $region68
      $region67: #{tpu_custom_call.1} parent=5 // pred_region
        %s1510 = ssub.s32 %s18, 2
        // Predicated region
        $region69: #{tpu_custom_call.1} parent=67 // pred_check
          %p1511 = pneg %p178
        $region70: #{tpu_custom_call.1} parent=67 // pred_check_branch
          %1513 = sbr.rel (%p1511) target = $region72
        $region71: #{tpu_custom_call.1} parent=67 // pred_region
          %s1514 = sand.u32 %s163, 1
          %s1515 = scalar_lea.sflag [#allocation4], %s1514
          %s1516 = sand.u32 %s163, 1
          %s1517 = smul.addr %s1516, 16
          %s1518 = scalar_lea.vmem [#allocation10], %s1517
          %1519 = dma.done %s1515, 256
        $region72: #{tpu_custom_call.1} parent=67 // pred_fallthru
          _
      $region68: #{tpu_custom_call.1} parent=5 // pred_fallthru
        _
    $region6: #{tpu_custom_call.1} parent=1 // loop_footer
      %s22 = sadd.s32 1, %s18
    $region7: #{tpu_custom_call.1} parent=1 // loop_footer_branch
      %17 = sbr.rel target = $region3
    $region8: #{tpu_custom_call.1} parent=1 // loop_exit
      _
    %1520 = vsyncpa [#allocation3], 1
    %s1521 = scalar_lea.sflag [#allocation3], 1
    %1522 = vsyncpa %s1521, 1
    %1523 = vsyncpa [#allocation6], 1
    %1524 = vsyncpa [#allocation9], 1
    %1525 = vsyncpa [#allocation4], 1
    %s1526 = scalar_lea.sflag [#allocation4], 1
    %1527 = vsyncpa %s1526, 1

</llo_original>
